<compile_context>
chip_gen: v5e
topology: v5e:2x2
jax: 0.10.0
libtpu: 0.0.40
codegen_flags: <defaults>
</compile_context>

<pallas_src>
import jax
import jax.numpy as jnp
from jax import lax
from jax.experimental import pallas as pl
from jax.experimental.pallas import tpu as pltpu


def _round_up(x, m):
    return (x + m - 1) // m * m


def _sigmoid(x):
    # sigmoid(x) == 0.5*(tanh(0.5x)+1): one EUP transcendental per gate.
    return 0.5 * (jnp.tanh(0.5 * x) + 1.0)


def _vmem_limit_bytes():
    """Per-generation scoped-VMEM budget: ~3/4 of physical, capped at 100 MiB."""
    cap = 64 << 20  # conservative default (v7x physical VMEM)
    try:
        info = pltpu.get_tpu_info()
        cap = int(getattr(info, "vmem_capacity_bytes", cap)) or cap
    except Exception:
        pass
    return max(32 << 20, min(cap * 3 // 4, 100 << 20))


def _num_tensorcores():
    """Best-effort TensorCores-per-chip (2 on v7x, 1 on v5e/v6e); fallback 1."""
    try:
        info = pltpu.get_tpu_info()
        for name in ("num_cores", "core_count", "num_tensorcores",
                     "tensorcores_per_chip", "num_tensor_cores"):
            n = getattr(info, name, None)
            if isinstance(n, int) and 1 <= n <= 8:
                return n
    except Exception:
        pass
    return 1


def _single_buffered_spec(block_shape, index_map):
    """Grid-invariant weight block: single-buffer it to halve resident VMEM.
    Falls back to the default (double-buffered) spec if this JAX build's
    BlockSpec does not accept pipeline_mode."""
    try:
        return pl.BlockSpec(block_shape, index_map, pipeline_mode=pl.Buffered(1))
    except Exception:
        return pl.BlockSpec(block_shape, index_map)


def _pick_v_block(vp, v_blk_max):
    """Largest multiple of 128 that divides vp and is <= v_blk_max, so the vocab
    axis is never rounded up a second time (no wasted MXU flops / HBM writes)."""
    best = 128
    d = 128
    while d <= min(vp, max(v_blk_max, 128)):
        if vp % d == 0:
            best = d
        d += 128
    return best


# --------------------------------------------------------------------------- #
# Kernel 1: sequential LSTM recurrence (only the work that cannot be hoisted). #
# --------------------------------------------------------------------------- #
def lstm_recurrence_kernel(pre_ref, whh_ref, h_out_ref, h_scr, c_scr, h_stage):
    """Grid = (batch_blocks [parallel], time_blocks [arbitrary]).

    pre_ref    : (T_BLK, B_BLK, 4H) bf16  precomputed x@W_ih + (b_ih+b_hh), time-major
    whh_ref    : (H, 4H)            bf16  hidden->gate weights (gate order i,f,g,o)
    h_out_ref  : (B_BLK, T_BLK, H)  bf16  hidden states, (B, T, H) layout
    h_scr/c_scr: (B_BLK, H)         f32   recurrent state, persists across time blocks
    h_stage    : (T_BLK, B_BLK, H)  bf16  time-major staging for dense per-step stores

    NOTE: the h/c carry in scratch is only correct because time is the innermost
    grid axis and marked "arbitrary" (reset at t_blk == 0); do not reorder.
    """
    t_blk_idx = pl.program_id(1)

    @pl.when(t_blk_idx == 0)
    def _():
        h_scr[...] = jnp.zeros_like(h_scr)
        c_scr[...] = jnp.zeros_like(c_scr)

    whh = whh_ref[...]                       # bf16, resident for the whole block
    hdim = h_scr.shape[-1]
    n_steps = pre_ref.shape[0]

    def step(s, carry):
        h, c = carry                          # f32 state (gate math stays f32)
        # MXU in bf16, f32 accumulation.
        gates = pre_ref[s].astype(jnp.float32) + jnp.dot(
            h.astype(jnp.bfloat16), whh, preferred_element_type=jnp.float32)
        i_g = _sigmoid(gates[:, 0 * hdim:1 * hdim])
        f_g = _sigmoid(gates[:, 1 * hdim:2 * hdim])
        g_g = jnp.tanh(gates[:, 2 * hdim:3 * hdim])
        o_g = _sigmoid(gates[:, 3 * hdim:4 * hdim])
        c = f_g * c + i_g * g_g
        h = o_g * jnp.tanh(c)
        # Dense (B_BLK, H) store on the leading (untiled) dim of the staging
        # scratch -- no masked single-sublane stores inside the hot loop.
        h_stage[s] = h.astype(h_stage.dtype)
        return h, c

    # fori_loop keeps vreg pressure bounded at large T_BLK / H; unroll=8 still
    # gives the scheduler straight-line work per rolled iteration.
    h, c = lax.fori_loop(0, n_steps, step, (h_scr[...], c_scr[...]),
                         unroll=min(8, n_steps))
    h_scr[...] = h
    c_scr[...] = c

    # Copy staged (time-major) hidden states into the (B, T, H)-layout output
    # block.  Static sublane indices only -- dynamic indexing of tiled dims and
    # 3-D leading-dim transposes are deliberately avoided.
    for s in range(n_steps):
        h_out_ref[:, s, :] = h_stage[s]


# --------------------------------------------------------------------------- #
# Kernel 2: fully parallel vocab projection; writes (B, T, V) directly.        #
# --------------------------------------------------------------------------- #
def vocab_projection_kernel(h_ref, wout_ref, bout_ref, o_ref):
    """Grid = (vocab_blocks, token_blocks) with vocab OUTER when V dominates,
    so the (H, V_BLK) W_out block is DMA'd once per v-block.

    h_ref    : (B_SUB, T_P, H)     bf16
    wout_ref : (H, V_BLK)          bf16
    bout_ref : (1, V_BLK)          f32
    o_ref    : (B_SUB, T_P, V_BLK) f32
    """
    b_sub, t_p, hdim = h_ref.shape
    h2 = h_ref[...].reshape(b_sub * t_p, hdim)       # leading-dim merge: free
    y = jnp.dot(h2, wout_ref[...], preferred_element_type=jnp.float32)
    y = y + bout_ref[...]
    o_ref[...] = y.reshape(b_sub, t_p, -1).astype(o_ref.dtype)


# --------------------------------------------------------------------------- #
# Wrapper: padding / layout plumbing + the two pallas_calls.                   #
# --------------------------------------------------------------------------- #
def lstm_language_model_forward(tokens, params, *, t_blk=32, v_blk_max=512,
                                m_target=256):
    """Forward pass of LSTMLanguageModel.forward(var) -> logits (B, T, V)."""
    embed = params["embed"]          # (V, E)
    wih = params["wih"]              # (E, 4H)   gate order i, f, g, o
    whh = params["whh"]              # (H, 4H)
    bias = params["b"]               # (1, 4H)   b_ih + b_hh
    wout = params["wout"]            # (H, V)
    bout = params["bout"]            # (1, V)

    B, T = tokens.shape
    V, E = embed.shape
    H = whh.shape[0]

    # ---- (8, 128)-aligned padded sizes --------------------------------------
    Bp = _round_up(B, 8)
    Ep = _round_up(E, 128)
    Hp = _round_up(H, 128)
    T_BLK = min(t_blk, _round_up(T, 8))
    Tp = _round_up(T, T_BLK)
    Vp = _round_up(V, 128)
    V_BLK = _pick_v_block(Vp, v_blk_max)

    # Split the batch across TensorCores only on multi-TC parts (v7x); on
    # single-TC v5e/v6e the grid is a serial loop and splitting just halves M.
    n_tc = _num_tensorcores()
    num_b = n_tc if (n_tc > 1 and Bp % (8 * n_tc) == 0) else 1
    B_BLK = Bp // num_b
    num_t = Tp // T_BLK
    num_v = Vp // V_BLK

    vmem_limit = _vmem_limit_bytes()

    # ---- per-gate zero-padding keeps the [i, f, g, o] blocks lane-aligned ----
    def pad_gate_mat(w, rows, rows_p):
        w4 = w.reshape(rows, 4, H)
        w4 = jnp.pad(w4, ((0, rows_p - rows), (0, 0), (0, Hp - H)))
        return w4.reshape(rows_p, 4 * Hp)

    wih_p = pad_gate_mat(wih, E, Ep).astype(jnp.bfloat16)
    whh_p = pad_gate_mat(whh, H, Hp).astype(jnp.bfloat16)
    bias_p = pad_gate_mat(bias, 1, 1)                         # f32
    embed_p = jnp.pad(embed, ((0, 0), (0, Ep - E)))
    wout_p = jnp.pad(wout, ((0, Hp - H), (0, Vp - V))).astype(jnp.bfloat16)
    bout_p = jnp.pad(bout, ((0, 0), (0, Vp - V)))             # f32

    # ---- embedding lookup + hoisted input->gate matmul (no recurrent dep) ----
    # One large parallel matmul left to XLA (per the perf review): bf16
    # operands, f32 accumulation, result stored bf16 and time-major.  The
    # transpose is done on the Ep-wide x, not the 4H-wide matmul output.
    x = embed_p.astype(jnp.bfloat16)[tokens]                  # (B, T, Ep)
    x = jnp.pad(x, ((0, Bp - B), (0, Tp - T), (0, 0)))        # (Bp, Tp, Ep)
    x_tm = jnp.transpose(x, (1, 0, 2))                        # (Tp, Bp, Ep)
    pre = jnp.einsum("tbe,eg->tbg", x_tm, wih_p,
                     preferred_element_type=jnp.float32)
    pre = (pre + bias_p[0]).astype(jnp.bfloat16)              # (Tp, Bp, 4Hp)

    # ---- sequential recurrence kernel ----------------------------------------
    h_all = pl.pallas_call(
        lstm_recurrence_kernel,
        out_shape=jax.ShapeDtypeStruct((Bp, Tp, Hp), jnp.bfloat16),
        grid_spec=pltpu.PrefetchScalarGridSpec(
            num_scalar_prefetch=0,
            grid=(num_b, num_t),
            in_specs=[
                pl.BlockSpec((T_BLK, B_BLK, 4 * Hp), lambda b, t: (t, b, 0)),
                # W_hh is grid-invariant: single-buffer it (bf16) so large H
                # does not blow the scoped-VMEM budget (esp. v7x 64 MiB).
                _single_buffered_spec((Hp, 4 * Hp), lambda b, t: (0, 0)),
            ],
            out_specs=pl.BlockSpec((B_BLK, T_BLK, Hp), lambda b, t: (b, t, 0)),
            scratch_shapes=[
                pltpu.VMEM((B_BLK, Hp), jnp.float32),           # h state (f32)
                pltpu.VMEM((B_BLK, Hp), jnp.float32),           # c state (f32)
                pltpu.VMEM((T_BLK, B_BLK, Hp), jnp.bfloat16),   # per-step staging
            ],
        ),
        compiler_params=pltpu.CompilerParams(
            dimension_semantics=("parallel", "arbitrary"),
            vmem_limit_bytes=vmem_limit),
    )(pre, whh_p)

    # ---- fully parallel vocab projection --------------------------------------
    # Token tile = (B_SUB batch rows) x (all Tp steps): M = B_SUB*Tp rows aimed
    # at ~m_target to fill the MXU.  Vocab axis goes OUTER when V dominates so
    # W_out is streamed once per v-block instead of once per token block.
    b_sub = 1
    for d in range(1, Bp + 1):
        if Bp % d == 0 and d * Tp <= max(m_target, Tp):
            b_sub = d
    num_m = Bp // b_sub

    if Vp >= Bp * Tp:
        proj_grid = (num_v, num_m)
        h_map = lambda v, m: (m, 0, 0)
        w_map = lambda v, m: (0, v)
        b_map = lambda v, m: (0, v)
        o_map = lambda v, m: (m, 0, v)
    else:
        proj_grid = (num_m, num_v)
        h_map = lambda m, v: (m, 0, 0)
        w_map = lambda m, v: (0, v)
        b_map = lambda m, v: (0, v)
        o_map = lambda m, v: (m, 0, v)

    logits_p = pl.pallas_call(
        vocab_projection_kernel,
        out_shape=jax.ShapeDtypeStruct((Bp, Tp, Vp), jnp.float32),
        grid_spec=pltpu.PrefetchScalarGridSpec(
            num_scalar_prefetch=0,
            grid=proj_grid,
            in_specs=[
                pl.BlockSpec((b_sub, Tp, Hp), h_map),
                # W_out changes only on the (rare, outer) v axis; default
                # double-buffering lets the next v-block prefetch overlap.
                pl.BlockSpec((Hp, V_BLK), w_map),
                pl.BlockSpec((1, V_BLK), b_map),
            ],
            out_specs=pl.BlockSpec((b_sub, Tp, V_BLK), o_map),
        ),
        compiler_params=pltpu.CompilerParams(
            dimension_semantics=("parallel", "parallel"),
            vmem_limit_bytes=vmem_limit),
    )(h_all, wout_p, bout_p)

    return logits_p[:B, :T, :V]


# --------------------------------------------------------------------------- #
# Pure-JAX reference (nn.Embedding + nn.LSTM + nn.Linear semantics, f32).       #
# --------------------------------------------------------------------------- #
def reference_forward(tokens, params):
    embed = params["embed"]
    x = jnp.transpose(embed[tokens], (1, 0, 2))   # (T, B, E)
    H = params["whh"].shape[0]

    def step(carry, x_t):
        h, c = carry
        gates = x_t @ params["wih"] + h @ params["whh"] + params["b"][0]
        i_g = jax.nn.sigmoid(gates[:, 0 * H:1 * H])
        f_g = jax.nn.sigmoid(gates[:, 1 * H:2 * H])
        g_g = jnp.tanh(gates[:, 2 * H:3 * H])
        o_g = jax.nn.sigmoid(gates[:, 3 * H:4 * H])
        c_new = f_g * c + i_g * g_g
        h_new = o_g * jnp.tanh(c_new)
        logits = h_new @ params["wout"] + params["bout"][0]
        return (h_new, c_new), logits

    B = tokens.shape[0]
    h0 = jnp.zeros((B, H), jnp.float32)
    c0 = jnp.zeros((B, H), jnp.float32)
    _, logits = jax.lax.scan(step, (h0, c0), x)
    return jnp.transpose(logits, (1, 0, 2))


def init_params(key, vocab_size, embed_dim, hidden_dim):
    """Deterministic synthetic parameters matching the module's __init__ shapes."""
    ks = jax.random.split(key, 6)
    inv_sqrt_h = 1.0 / jnp.sqrt(hidden_dim)
    return {
        # nn.Embedding(num_embeddings, embed_dim), init normal(0, embed_dim**-0.5)
        "embed": jax.random.normal(ks[0], (vocab_size, embed_dim), jnp.float32)
                 * (embed_dim ** -0.5),
        # nn.LSTM weights (PyTorch gate order i, f, g, o), stored pre-transposed
        "wih": jax.random.uniform(ks[1], (embed_dim, 4 * hidden_dim), jnp.float32,
                                  -inv_sqrt_h, inv_sqrt_h),
        "whh": jax.random.uniform(ks[2], (hidden_dim, 4 * hidden_dim), jnp.float32,
                                  -inv_sqrt_h, inv_sqrt_h),
        # combined bias b_ih + b_hh
        "b": jax.random.uniform(ks[3], (1, 4 * hidden_dim), jnp.float32,
                                -inv_sqrt_h, inv_sqrt_h),
        # nn.Linear(hidden_dim, vocab_size) output projection, stored pre-transposed
        "wout": jax.random.uniform(ks[4], (hidden_dim, vocab_size), jnp.float32,
                                   -inv_sqrt_h, inv_sqrt_h),
        "bout": jax.random.uniform(ks[5], (1, vocab_size), jnp.float32,
                                   -inv_sqrt_h, inv_sqrt_h),
    }


if __name__ == "__main__":
    B, T = 2, 8            # batch, sequence length
    V, E, H = 32, 32, 32   # vocab, embed_dim, hidden_dim

    key = jax.random.PRNGKey(0)
    k_tok, k_par = jax.random.split(key)
    tokens = jax.random.randint(k_tok, (B, T), 0, V, dtype=jnp.int32)
    params = init_params(k_par, V, E, H)

    fwd = jax.jit(lstm_language_model_forward)
    logits = jax.block_until_ready(fwd(tokens, params))

    ref = reference_forward(tokens, params)
    assert logits.shape == (B, T, V)
    # bf16 MXU operands (f32 accumulation / gate math) vs the f32 reference.
    assert jnp.allclose(logits, ref, atol=5e-2, rtol=5e-2), \
        "mismatch vs JAX reference"

    print("KERNEL_OK")
</pallas_src>

<mosaic_0001>
module attributes {stable_mosaic.version = 11 : i64} {
  func.func @vocab_projection_kernel(%arg0: i32, %arg1: i32, %arg2: memref<8x8x128xbf16, #tpu.memory_space<vmem>>, %arg3: memref<128x128xbf16, #tpu.memory_space<vmem>>, %arg4: memref<1x128xf32, #tpu.memory_space<vmem>>, %arg5: memref<8x8x128xf32, #tpu.memory_space<vmem>>) attributes {dimension_semantics = [#tpu.dimension_semantics<parallel>, #tpu.dimension_semantics<parallel>], iteration_bounds = array<i64: 1, 1>, scalar_prefetch = 0 : i64, scratch_operands = 0 : i64, tpu.core_type = #tpu.core_type<tc>, window_params = [{transform_indices = @transform_0, window_bounds = array<i64: 8, 8, 128>}, {transform_indices = @transform_1, window_bounds = array<i64: 128, 128>}, {transform_indices = @transform_2, window_bounds = array<i64: 1, 128>}, {transform_indices = @transform_3, window_bounds = array<i64: 8, 8, 128>}]} {
    %c0 = arith.constant 0 : index
    %c0_0 = arith.constant 0 : index
    %c0_1 = arith.constant 0 : index
    %0 = vector.load %arg2[%c0, %c0_0, %c0_1] : memref<8x8x128xbf16, #tpu.memory_space<vmem>>, vector<8x8x128xbf16>
    %1 = vector.shape_cast %0 : vector<8x8x128xbf16> to vector<64x128xbf16>
    %c0_2 = arith.constant 0 : index
    %c0_3 = arith.constant 0 : index
    %2 = vector.load %arg3[%c0_2, %c0_3] : memref<128x128xbf16, #tpu.memory_space<vmem>>, vector<128x128xbf16>
    %cst = arith.constant dense<0.000000e+00> : vector<64x128xf32>
    %3 = tpu.matmul %1, %2, %cst {dimension_numbers = #tpu.dot_dimension_numbers<[1], [0], [0], [1], [0, 0, 1, 1], [], []>} : vector<64x128xbf16>, vector<128x128xbf16>, vector<64x128xf32> -> vector<64x128xf32>
    %c0_4 = arith.constant 0 : index
    %c0_5 = arith.constant 0 : index
    %4 = vector.load %arg4[%c0_4, %c0_5] : memref<1x128xf32, #tpu.memory_space<vmem>>, vector<1x128xf32>
    %5 = vector.broadcast %4 : vector<1x128xf32> to vector<64x128xf32>
    %6 = arith.addf %3, %5 : vector<64x128xf32>
    %7 = vector.shape_cast %6 : vector<64x128xf32> to vector<8x8x128xf32>
    %c0_6 = arith.constant 0 : index
    %c0_7 = arith.constant 0 : index
    %c0_8 = arith.constant 0 : index
    %8 = vector.load %arg5[%c0_6, %c0_7, %c0_8] : memref<8x8x128xf32, #tpu.memory_space<vmem>>, vector<8x8x128xf32>
    tpu.vector_store %arg5[%c0_6, %c0_7, %c0_8], %7 {strides = array<i32>} : memref<8x8x128xf32, #tpu.memory_space<vmem>>, vector<8x8x128xf32>,
    return
  }
  func.func @transform_0(%arg0: i32, %arg1: i32) -> (i32, i32, i32) {
    %c0_i32 = arith.constant 0 : i32
    %c0_i32_0 = arith.constant 0 : i32
    %c0_i32_1 = arith.constant 0 : i32
    return %arg1, %c0_i32, %c0_i32_0 : i32, i32, i32
  }
  func.func @transform_1(%arg0: i32, %arg1: i32) -> (i32, i32) {
    %c0_i32 = arith.constant 0 : i32
    %c0_i32_0 = arith.constant 0 : i32
    return %c0_i32, %arg0 : i32, i32
  }
  func.func @transform_2(%arg0: i32, %arg1: i32) -> (i32, i32) {
    %c0_i32 = arith.constant 0 : i32
    %c0_i32_0 = arith.constant 0 : i32
    return %c0_i32, %arg0 : i32, i32
  }
  func.func @transform_3(%arg0: i32, %arg1: i32) -> (i32, i32, i32) {
    %c0_i32 = arith.constant 0 : i32
    %c0_i32_0 = arith.constant 0 : i32
    return %arg1, %c0_i32, %arg0 : i32, i32, i32
  }
}

module attributes {stable_mosaic.version = 11 : i64} {
  func.func @lstm_recurrence_kernel(%arg0: i32, %arg1: i32, %arg2: memref<8x8x512xbf16, #tpu.memory_space<vmem>>, %arg3: memref<128x512xbf16, #tpu.memory_space<vmem>>, %arg4: memref<8x8x128xbf16, #tpu.memory_space<vmem>>, %arg5: memref<8x128xf32, #tpu.memory_space<vmem>>, %arg6: memref<8x128xf32, #tpu.memory_space<vmem>>, %arg7: memref<8x8x128xbf16, #tpu.memory_space<vmem>>) attributes {dimension_semantics = [#tpu.dimension_semantics<parallel>, #tpu.dimension_semantics<arbitrary>], iteration_bounds = array<i64: 1, 1>, scalar_prefetch = 0 : i64, scratch_operands = 3 : i64, tpu.core_type = #tpu.core_type<tc>, window_params = [{transform_indices = @transform_0, window_bounds = array<i64: 8, 8, 512>}, {pipeline_mode = #tpu.pipeline_mode<synchronous>, transform_indices = @transform_1, window_bounds = array<i64: 128, 512>}, {transform_indices = @transform_2, window_bounds = array<i64: 8, 8, 128>}]} {
    %c0_i32 = arith.constant 0 : i32
    %0 = arith.cmpi eq, %arg1, %c0_i32 : i32
    %1 = arith.extui %0 : i1 to i32
    %c0_i32_0 = arith.constant 0 : i32
    %2 = arith.cmpi ne, %1, %c0_i32_0 : i32
    scf.if %2 {
      %cst_163 = arith.constant 0.000000e+00 : f32
      %392 = vector.broadcast %cst_163 : f32 to vector<8x128xf32>
      %c0_164 = arith.constant 0 : index
      %c0_165 = arith.constant 0 : index
      %393 = vector.load %arg5[%c0_164, %c0_165] : memref<8x128xf32, #tpu.memory_space<vmem>>, vector<8x128xf32>
      tpu.vector_store %arg5[%c0_164, %c0_165], %392 {strides = array<i32>} : memref<8x128xf32, #tpu.memory_space<vmem>>, vector<8x128xf32>,
      %cst_166 = arith.constant 0.000000e+00 : f32
      %394 = vector.broadcast %cst_166 : f32 to vector<8x128xf32>
      %c0_167 = arith.constant 0 : index
      %c0_168 = arith.constant 0 : index
      %395 = vector.load %arg6[%c0_167, %c0_168] : memref<8x128xf32, #tpu.memory_space<vmem>>, vector<8x128xf32>
      tpu.vector_store %arg6[%c0_167, %c0_168], %394 {strides = array<i32>} : memref<8x128xf32, #tpu.memory_space<vmem>>, vector<8x128xf32>,
    } else {
    }
    %c0 = arith.constant 0 : index
    %c0_1 = arith.constant 0 : index
    %3 = vector.load %arg3[%c0, %c0_1] : memref<128x512xbf16, #tpu.memory_space<vmem>>, vector<128x512xbf16>
    %c0_2 = arith.constant 0 : index
    %c0_3 = arith.constant 0 : index
    %4 = vector.load %arg5[%c0_2, %c0_3] : memref<8x128xf32, #tpu.memory_space<vmem>>, vector<8x128xf32>
    %c0_4 = arith.constant 0 : index
    %c0_5 = arith.constant 0 : index
    %5 = vector.load %arg6[%c0_4, %c0_5] : memref<8x128xf32, #tpu.memory_space<vmem>>, vector<8x128xf32>
    %c0_i32_6 = arith.constant 0 : i32
    %6 = arith.index_cast %c0_i32_6 : i32 to index
    %c0_7 = arith.constant 0 : index
    %c0_8 = arith.constant 0 : index
    %7 = vector.load %arg2[%6, %c0_7, %c0_8] : memref<8x8x512xbf16, #tpu.memory_space<vmem>>, vector<1x8x512xbf16>
    %8 = vector.shape_cast %7 : vector<1x8x512xbf16> to vector<8x512xbf16>
    %9 = arith.extf %8 : vector<8x512xbf16> to vector<8x512xf32>
    %10 = arith.truncf %4 : vector<8x128xf32> to vector<8x128xbf16>
    %cst = arith.constant dense<0.000000e+00> : vector<8x512xf32>
    %11 = tpu.matmul %10, %3, %cst {dimension_numbers = #tpu.dot_dimension_numbers<[1], [0], [0], [1], [0, 0, 1, 1], [], []>} : vector<8x128xbf16>, vector<128x512xbf16>, vector<8x512xf32> -> vector<8x512xf32>
    %12 = arith.addf %9, %11 : vector<8x512xf32>
    %13 = vector.extract_strided_slice %12 {offsets = [0, 0], sizes = [8, 128], strides = [1, 1]} : vector<8x512xf32> to vector<8x128xf32>
    %cst_9 = arith.constant 5.000000e-01 : f32
    %14 = vector.broadcast %cst_9 : f32 to vector<8x128xf32>
    %15 = arith.mulf %14, %13 : vector<8x128xf32>
    %16 = math.tanh %15 : vector<8x128xf32>
    %cst_10 = arith.constant 1.000000e+00 : f32
    %17 = vector.broadcast %cst_10 : f32 to vector<8x128xf32>
    %18 = arith.addf %16, %17 : vector<8x128xf32>
    %cst_11 = arith.constant 5.000000e-01 : f32
    %19 = vector.broadcast %cst_11 : f32 to vector<8x128xf32>
    %20 = arith.mulf %19, %18 : vector<8x128xf32>
    %21 = vector.extract_strided_slice %12 {offsets = [0, 128], sizes = [8, 128], strides = [1, 1]} : vector<8x512xf32> to vector<8x128xf32>
    %cst_12 = arith.constant 5.000000e-01 : f32
    %22 = vector.broadcast %cst_12 : f32 to vector<8x128xf32>
    %23 = arith.mulf %22, %21 : vector<8x128xf32>
    %24 = math.tanh %23 : vector<8x128xf32>
    %cst_13 = arith.constant 1.000000e+00 : f32
    %25 = vector.broadcast %cst_13 : f32 to vector<8x128xf32>
    %26 = arith.addf %24, %25 : vector<8x128xf32>
    %cst_14 = arith.constant 5.000000e-01 : f32
    %27 = vector.broadcast %cst_14 : f32 to vector<8x128xf32>
    %28 = arith.mulf %27, %26 : vector<8x128xf32>
    %29 = vector.extract_strided_slice %12 {offsets = [0, 256], sizes = [8, 128], strides = [1, 1]} : vector<8x512xf32> to vector<8x128xf32>
    %30 = math.tanh %29 : vector<8x128xf32>
    %31 = vector.extract_strided_slice %12 {offsets = [0, 384], sizes = [8, 128], strides = [1, 1]} : vector<8x512xf32> to vector<8x128xf32>
    %cst_15 = arith.constant 5.000000e-01 : f32
    %32 = vector.broadcast %cst_15 : f32 to vector<8x128xf32>
    %33 = arith.mulf %32, %31 : vector<8x128xf32>
    %34 = math.tanh %33 : vector<8x128xf32>
    %cst_16 = arith.constant 1.000000e+00 : f32
    %35 = vector.broadcast %cst_16 : f32 to vector<8x128xf32>
    %36 = arith.addf %34, %35 : vector<8x128xf32>
    %cst_17 = arith.constant 5.000000e-01 : f32
    %37 = vector.broadcast %cst_17 : f32 to vector<8x128xf32>
    %38 = arith.mulf %37, %36 : vector<8x128xf32>
    %39 = arith.mulf %28, %5 : vector<8x128xf32>
    %40 = arith.mulf %20, %30 : vector<8x128xf32>
    %41 = arith.addf %39, %40 : vector<8x128xf32>
    %42 = math.tanh %41 : vector<8x128xf32>
    %43 = arith.mulf %38, %42 : vector<8x128xf32>
    %44 = arith.truncf %43 : vector<8x128xf32> to vector<8x128xbf16>
    %45 = arith.index_cast %c0_i32_6 : i32 to index
    %c0_18 = arith.constant 0 : index
    %c0_19 = arith.constant 0 : index
    %46 = vector.load %arg7[%45, %c0_18, %c0_19] : memref<8x8x128xbf16, #tpu.memory_space<vmem>>, vector<1x8x128xbf16>
    %47 = vector.shape_cast %46 : vector<1x8x128xbf16> to vector<8x128xbf16>
    %48 = vector.shape_cast %44 : vector<8x128xbf16> to vector<1x8x128xbf16>
    tpu.vector_store %arg7[%45, %c0_18, %c0_19], %48 {strides = array<i32>} : memref<8x8x128xbf16, #tpu.memory_space<vmem>>, vector<1x8x128xbf16>,
    %c1_i32 = arith.constant 1 : i32
    %49 = arith.index_cast %c1_i32 : i32 to index
    %c0_20 = arith.constant 0 : index
    %c0_21 = arith.constant 0 : index
    %50 = vector.load %arg2[%49, %c0_20, %c0_21] : memref<8x8x512xbf16, #tpu.memory_space<vmem>>, vector<1x8x512xbf16>
    %51 = vector.shape_cast %50 : vector<1x8x512xbf16> to vector<8x512xbf16>
    %52 = arith.extf %51 : vector<8x512xbf16> to vector<8x512xf32>
    %53 = arith.truncf %43 : vector<8x128xf32> to vector<8x128xbf16>
    %cst_22 = arith.constant dense<0.000000e+00> : vector<8x512xf32>
    %54 = tpu.matmul %53, %3, %cst_22 {dimension_numbers = #tpu.dot_dimension_numbers<[1], [0], [0], [1], [0, 0, 1, 1], [], []>} : vector<8x128xbf16>, vector<128x512xbf16>, vector<8x512xf32> -> vector<8x512xf32>
    %55 = arith.addf %52, %54 : vector<8x512xf32>
    %56 = vector.extract_strided_slice %55 {offsets = [0, 0], sizes = [8, 128], strides = [1, 1]} : vector<8x512xf32> to vector<8x128xf32>
    %cst_23 = arith.constant 5.000000e-01 : f32
    %57 = vector.broadcast %cst_23 : f32 to vector<8x128xf32>
    %58 = arith.mulf %57, %56 : vector<8x128xf32>
    %59 = math.tanh %58 : vector<8x128xf32>
    %cst_24 = arith.constant 1.000000e+00 : f32
    %60 = vector.broadcast %cst_24 : f32 to vector<8x128xf32>
    %61 = arith.addf %59, %60 : vector<8x128xf32>
    %cst_25 = arith.constant 5.000000e-01 : f32
    %62 = vector.broadcast %cst_25 : f32 to vector<8x128xf32>
    %63 = arith.mulf %62, %61 : vector<8x128xf32>
    %64 = vector.extract_strided_slice %55 {offsets = [0, 128], sizes = [8, 128], strides = [1, 1]} : vector<8x512xf32> to vector<8x128xf32>
    %cst_26 = arith.constant 5.000000e-01 : f32
    %65 = vector.broadcast %cst_26 : f32 to vector<8x128xf32>
    %66 = arith.mulf %65, %64 : vector<8x128xf32>
    %67 = math.tanh %66 : vector<8x128xf32>
    %cst_27 = arith.constant 1.000000e+00 : f32
    %68 = vector.broadcast %cst_27 : f32 to vector<8x128xf32>
    %69 = arith.addf %67, %68 : vector<8x128xf32>
    %cst_28 = arith.constant 5.000000e-01 : f32
    %70 = vector.broadcast %cst_28 : f32 to vector<8x128xf32>
    %71 = arith.mulf %70, %69 : vector<8x128xf32>
    %72 = vector.extract_strided_slice %55 {offsets = [0, 256], sizes = [8, 128], strides = [1, 1]} : vector<8x512xf32> to vector<8x128xf32>
    %73 = math.tanh %72 : vector<8x128xf32>
    %74 = vector.extract_strided_slice %55 {offsets = [0, 384], sizes = [8, 128], strides = [1, 1]} : vector<8x512xf32> to vector<8x128xf32>
    %cst_29 = arith.constant 5.000000e-01 : f32
    %75 = vector.broadcast %cst_29 : f32 to vector<8x128xf32>
    %76 = arith.mulf %75, %74 : vector<8x128xf32>
    %77 = math.tanh %76 : vector<8x128xf32>
    %cst_30 = arith.constant 1.000000e+00 : f32
    %78 = vector.broadcast %cst_30 : f32 to vector<8x128xf32>
    %79 = arith.addf %77, %78 : vector<8x128xf32>
    %cst_31 = arith.constant 5.000000e-01 : f32
    %80 = vector.broadcast %cst_31 : f32 to vector<8x128xf32>
    %81 = arith.mulf %80, %79 : vector<8x128xf32>
    %82 = arith.mulf %71, %41 : vector<8x128xf32>
    %83 = arith.mulf %63, %73 : vector<8x128xf32>
    %84 = arith.addf %82, %83 : vector<8x128xf32>
    %85 = math.tanh %84 : vector<8x128xf32>
    %86 = arith.mulf %81, %85 : vector<8x128xf32>
    %87 = arith.truncf %86 : vector<8x128xf32> to vector<8x128xbf16>
    %88 = arith.index_cast %c1_i32 : i32 to index
    %c0_32 = arith.constant 0 : index
    %c0_33 = arith.constant 0 : index
    %89 = vector.load %arg7[%88, %c0_32, %c0_33] : memref<8x8x128xbf16, #tpu.memory_space<vmem>>, vector<1x8x128xbf16>
    %90 = vector.shape_cast %89 : vector<1x8x128xbf16> to vector<8x128xbf16>
    %91 = vector.shape_cast %87 : vector<8x128xbf16> to vector<1x8x128xbf16>
    tpu.vector_store %arg7[%88, %c0_32, %c0_33], %91 {strides = array<i32>} : memref<8x8x128xbf16, #tpu.memory_space<vmem>>, vector<1x8x128xbf16>,
    %c2_i32 = arith.constant 2 : i32
    %92 = arith.index_cast %c2_i32 : i32 to index
    %c0_34 = arith.constant 0 : index
    %c0_35 = arith.constant 0 : index
    %93 = vector.load %arg2[%92, %c0_34, %c0_35] : memref<8x8x512xbf16, #tpu.memory_space<vmem>>, vector<1x8x512xbf16>
    %94 = vector.shape_cast %93 : vector<1x8x512xbf16> to vector<8x512xbf16>
    %95 = arith.extf %94 : vector<8x512xbf16> to vector<8x512xf32>
    %96 = arith.truncf %86 : vector<8x128xf32> to vector<8x128xbf16>
    %cst_36 = arith.constant dense<0.000000e+00> : vector<8x512xf32>
    %97 = tpu.matmul %96, %3, %cst_36 {dimension_numbers = #tpu.dot_dimension_numbers<[1], [0], [0], [1], [0, 0, 1, 1], [], []>} : vector<8x128xbf16>, vector<128x512xbf16>, vector<8x512xf32> -> vector<8x512xf32>
    %98 = arith.addf %95, %97 : vector<8x512xf32>
    %99 = vector.extract_strided_slice %98 {offsets = [0, 0], sizes = [8, 128], strides = [1, 1]} : vector<8x512xf32> to vector<8x128xf32>
    %cst_37 = arith.constant 5.000000e-01 : f32
    %100 = vector.broadcast %cst_37 : f32 to vector<8x128xf32>
    %101 = arith.mulf %100, %99 : vector<8x128xf32>
    %102 = math.tanh %101 : vector<8x128xf32>
    %cst_38 = arith.constant 1.000000e+00 : f32
    %103 = vector.broadcast %cst_38 : f32 to vector<8x128xf32>
    %104 = arith.addf %102, %103 : vector<8x128xf32>
    %cst_39 = arith.constant 5.000000e-01 : f32
    %105 = vector.broadcast %cst_39 : f32 to vector<8x128xf32>
    %106 = arith.mulf %105, %104 : vector<8x128xf32>
    %107 = vector.extract_strided_slice %98 {offsets = [0, 128], sizes = [8, 128], strides = [1, 1]} : vector<8x512xf32> to vector<8x128xf32>
    %cst_40 = arith.constant 5.000000e-01 : f32
    %108 = vector.broadcast %cst_40 : f32 to vector<8x128xf32>
    %109 = arith.mulf %108, %107 : vector<8x128xf32>
    %110 = math.tanh %109 : vector<8x128xf32>
    %cst_41 = arith.constant 1.000000e+00 : f32
    %111 = vector.broadcast %cst_41 : f32 to vector<8x128xf32>
    %112 = arith.addf %110, %111 : vector<8x128xf32>
    %cst_42 = arith.constant 5.000000e-01 : f32
    %113 = vector.broadcast %cst_42 : f32 to vector<8x128xf32>
    %114 = arith.mulf %113, %112 : vector<8x128xf32>
    %115 = vector.extract_strided_slice %98 {offsets = [0, 256], sizes = [8, 128], strides = [1, 1]} : vector<8x512xf32> to vector<8x128xf32>
    %116 = math.tanh %115 : vector<8x128xf32>
    %117 = vector.extract_strided_slice %98 {offsets = [0, 384], sizes = [8, 128], strides = [1, 1]} : vector<8x512xf32> to vector<8x128xf32>
    %cst_43 = arith.constant 5.000000e-01 : f32
    %118 = vector.broadcast %cst_43 : f32 to vector<8x128xf32>
    %119 = arith.mulf %118, %117 : vector<8x128xf32>
    %120 = math.tanh %119 : vector<8x128xf32>
    %cst_44 = arith.constant 1.000000e+00 : f32
    %121 = vector.broadcast %cst_44 : f32 to vector<8x128xf32>
    %122 = arith.addf %120, %121 : vector<8x128xf32>
    %cst_45 = arith.constant 5.000000e-01 : f32
    %123 = vector.broadcast %cst_45 : f32 to vector<8x128xf32>
    %124 = arith.mulf %123, %122 : vector<8x128xf32>
    %125 = arith.mulf %114, %84 : vector<8x128xf32>
    %126 = arith.mulf %106, %116 : vector<8x128xf32>
    %127 = arith.addf %125, %126 : vector<8x128xf32>
    %128 = math.tanh %127 : vector<8x128xf32>
    %129 = arith.mulf %124, %128 : vector<8x128xf32>
    %130 = arith.truncf %129 : vector<8x128xf32> to vector<8x128xbf16>
    %131 = arith.index_cast %c2_i32 : i32 to index
    %c0_46 = arith.constant 0 : index
    %c0_47 = arith.constant 0 : index
    %132 = vector.load %arg7[%131, %c0_46, %c0_47] : memref<8x8x128xbf16, #tpu.memory_space<vmem>>, vector<1x8x128xbf16>
    %133 = vector.shape_cast %132 : vector<1x8x128xbf16> to vector<8x128xbf16>
    %134 = vector.shape_cast %130 : vector<8x128xbf16> to vector<1x8x128xbf16>
    tpu.vector_store %arg7[%131, %c0_46, %c0_47], %134 {strides = array<i32>} : memref<8x8x128xbf16, #tpu.memory_space<vmem>>, vector<1x8x128xbf16>,
    %c3_i32 = arith.constant 3 : i32
    %135 = arith.index_cast %c3_i32 : i32 to index
    %c0_48 = arith.constant 0 : index
    %c0_49 = arith.constant 0 : index
    %136 = vector.load %arg2[%135, %c0_48, %c0_49] : memref<8x8x512xbf16, #tpu.memory_space<vmem>>, vector<1x8x512xbf16>
    %137 = vector.shape_cast %136 : vector<1x8x512xbf16> to vector<8x512xbf16>
    %138 = arith.extf %137 : vector<8x512xbf16> to vector<8x512xf32>
    %139 = arith.truncf %129 : vector<8x128xf32> to vector<8x128xbf16>
    %cst_50 = arith.constant dense<0.000000e+00> : vector<8x512xf32>
    %140 = tpu.matmul %139, %3, %cst_50 {dimension_numbers = #tpu.dot_dimension_numbers<[1], [0], [0], [1], [0, 0, 1, 1], [], []>} : vector<8x128xbf16>, vector<128x512xbf16>, vector<8x512xf32> -> vector<8x512xf32>
    %141 = arith.addf %138, %140 : vector<8x512xf32>
    %142 = vector.extract_strided_slice %141 {offsets = [0, 0], sizes = [8, 128], strides = [1, 1]} : vector<8x512xf32> to vector<8x128xf32>
    %cst_51 = arith.constant 5.000000e-01 : f32
    %143 = vector.broadcast %cst_51 : f32 to vector<8x128xf32>
    %144 = arith.mulf %143, %142 : vector<8x128xf32>
    %145 = math.tanh %144 : vector<8x128xf32>
    %cst_52 = arith.constant 1.000000e+00 : f32
    %146 = vector.broadcast %cst_52 : f32 to vector<8x128xf32>
    %147 = arith.addf %145, %146 : vector<8x128xf32>
    %cst_53 = arith.constant 5.000000e-01 : f32
    %148 = vector.broadcast %cst_53 : f32 to vector<8x128xf32>
    %149 = arith.mulf %148, %147 : vector<8x128xf32>
    %150 = vector.extract_strided_slice %141 {offsets = [0, 128], sizes = [8, 128], strides = [1, 1]} : vector<8x512xf32> to vector<8x128xf32>
    %cst_54 = arith.constant 5.000000e-01 : f32
    %151 = vector.broadcast %cst_54 : f32 to vector<8x128xf32>
    %152 = arith.mulf %151, %150 : vector<8x128xf32>
    %153 = math.tanh %152 : vector<8x128xf32>
    %cst_55 = arith.constant 1.000000e+00 : f32
    %154 = vector.broadcast %cst_55 : f32 to vector<8x128xf32>
    %155 = arith.addf %153, %154 : vector<8x128xf32>
    %cst_56 = arith.constant 5.000000e-01 : f32
    %156 = vector.broadcast %cst_56 : f32 to vector<8x128xf32>
    %157 = arith.mulf %156, %155 : vector<8x128xf32>
    %158 = vector.extract_strided_slice %141 {offsets = [0, 256], sizes = [8, 128], strides = [1, 1]} : vector<8x512xf32> to vector<8x128xf32>
    %159 = math.tanh %158 : vector<8x128xf32>
    %160 = vector.extract_strided_slice %141 {offsets = [0, 384], sizes = [8, 128], strides = [1, 1]} : vector<8x512xf32> to vector<8x128xf32>
    %cst_57 = arith.constant 5.000000e-01 : f32
    %161 = vector.broadcast %cst_57 : f32 to vector<8x128xf32>
    %162 = arith.mulf %161, %160 : vector<8x128xf32>
    %163 = math.tanh %162 : vector<8x128xf32>
    %cst_58 = arith.constant 1.000000e+00 : f32
    %164 = vector.broadcast %cst_58 : f32 to vector<8x128xf32>
    %165 = arith.addf %163, %164 : vector<8x128xf32>
    %cst_59 = arith.constant 5.000000e-01 : f32
    %166 = vector.broadcast %cst_59 : f32 to vector<8x128xf32>
    %167 = arith.mulf %166, %165 : vector<8x128xf32>
    %168 = arith.mulf %157, %127 : vector<8x128xf32>
    %169 = arith.mulf %149, %159 : vector<8x128xf32>
    %170 = arith.addf %168, %169 : vector<8x128xf32>
    %171 = math.tanh %170 : vector<8x128xf32>
    %172 = arith.mulf %167, %171 : vector<8x128xf32>
    %173 = arith.truncf %172 : vector<8x128xf32> to vector<8x128xbf16>
    %174 = arith.index_cast %c3_i32 : i32 to index
    %c0_60 = arith.constant 0 : index
    %c0_61 = arith.constant 0 : index
    %175 = vector.load %arg7[%174, %c0_60, %c0_61] : memref<8x8x128xbf16, #tpu.memory_space<vmem>>, vector<1x8x128xbf16>
    %176 = vector.shape_cast %175 : vector<1x8x128xbf16> to vector<8x128xbf16>
    %177 = vector.shape_cast %173 : vector<8x128xbf16> to vector<1x8x128xbf16>
    tpu.vector_store %arg7[%174, %c0_60, %c0_61], %177 {strides = array<i32>} : memref<8x8x128xbf16, #tpu.memory_space<vmem>>, vector<1x8x128xbf16>,
    %c4_i32 = arith.constant 4 : i32
    %178 = arith.index_cast %c4_i32 : i32 to index
    %c0_62 = arith.constant 0 : index
    %c0_63 = arith.constant 0 : index
    %179 = vector.load %arg2[%178, %c0_62, %c0_63] : memref<8x8x512xbf16, #tpu.memory_space<vmem>>, vector<1x8x512xbf16>
    %180 = vector.shape_cast %179 : vector<1x8x512xbf16> to vector<8x512xbf16>
    %181 = arith.extf %180 : vector<8x512xbf16> to vector<8x512xf32>
    %182 = arith.truncf %172 : vector<8x128xf32> to vector<8x128xbf16>
    %cst_64 = arith.constant dense<0.000000e+00> : vector<8x512xf32>
    %183 = tpu.matmul %182, %3, %cst_64 {dimension_numbers = #tpu.dot_dimension_numbers<[1], [0], [0], [1], [0, 0, 1, 1], [], []>} : vector<8x128xbf16>, vector<128x512xbf16>, vector<8x512xf32> -> vector<8x512xf32>
    %184 = arith.addf %181, %183 : vector<8x512xf32>
    %185 = vector.extract_strided_slice %184 {offsets = [0, 0], sizes = [8, 128], strides = [1, 1]} : vector<8x512xf32> to vector<8x128xf32>
    %cst_65 = arith.constant 5.000000e-01 : f32
    %186 = vector.broadcast %cst_65 : f32 to vector<8x128xf32>
    %187 = arith.mulf %186, %185 : vector<8x128xf32>
    %188 = math.tanh %187 : vector<8x128xf32>
    %cst_66 = arith.constant 1.000000e+00 : f32
    %189 = vector.broadcast %cst_66 : f32 to vector<8x128xf32>
    %190 = arith.addf %188, %189 : vector<8x128xf32>
    %cst_67 = arith.constant 5.000000e-01 : f32
    %191 = vector.broadcast %cst_67 : f32 to vector<8x128xf32>
    %192 = arith.mulf %191, %190 : vector<8x128xf32>
    %193 = vector.extract_strided_slice %184 {offsets = [0, 128], sizes = [8, 128], strides = [1, 1]} : vector<8x512xf32> to vector<8x128xf32>
    %cst_68 = arith.constant 5.000000e-01 : f32
    %194 = vector.broadcast %cst_68 : f32 to vector<8x128xf32>
    %195 = arith.mulf %194, %193 : vector<8x128xf32>
    %196 = math.tanh %195 : vector<8x128xf32>
    %cst_69 = arith.constant 1.000000e+00 : f32
    %197 = vector.broadcast %cst_69 : f32 to vector<8x128xf32>
    %198 = arith.addf %196, %197 : vector<8x128xf32>
    %cst_70 = arith.constant 5.000000e-01 : f32
    %199 = vector.broadcast %cst_70 : f32 to vector<8x128xf32>
    %200 = arith.mulf %199, %198 : vector<8x128xf32>
    %201 = vector.extract_strided_slice %184 {offsets = [0, 256], sizes = [8, 128], strides = [1, 1]} : vector<8x512xf32> to vector<8x128xf32>
    %202 = math.tanh %201 : vector<8x128xf32>
    %203 = vector.extract_strided_slice %184 {offsets = [0, 384], sizes = [8, 128], strides = [1, 1]} : vector<8x512xf32> to vector<8x128xf32>
    %cst_71 = arith.constant 5.000000e-01 : f32
    %204 = vector.broadcast %cst_71 : f32 to vector<8x128xf32>
    %205 = arith.mulf %204, %203 : vector<8x128xf32>
    %206 = math.tanh %205 : vector<8x128xf32>
    %cst_72 = arith.constant 1.000000e+00 : f32
    %207 = vector.broadcast %cst_72 : f32 to vector<8x128xf32>
    %208 = arith.addf %206, %207 : vector<8x128xf32>
    %cst_73 = arith.constant 5.000000e-01 : f32
    %209 = vector.broadcast %cst_73 : f32 to vector<8x128xf32>
    %210 = arith.mulf %209, %208 : vector<8x128xf32>
    %211 = arith.mulf %200, %170 : vector<8x128xf32>
    %212 = arith.mulf %192, %202 : vector<8x128xf32>
    %213 = arith.addf %211, %212 : vector<8x128xf32>
    %214 = math.tanh %213 : vector<8x128xf32>
    %215 = arith.mulf %210, %214 : vector<8x128xf32>
    %216 = arith.truncf %215 : vector<8x128xf32> to vector<8x128xbf16>
    %217 = arith.index_cast %c4_i32 : i32 to index
    %c0_74 = arith.constant 0 : index
    %c0_75 = arith.constant 0 : index
    %218 = vector.load %arg7[%217, %c0_74, %c0_75] : memref<8x8x128xbf16, #tpu.memory_space<vmem>>, vector<1x8x128xbf16>
    %219 = vector.shape_cast %218 : vector<1x8x128xbf16> to vector<8x128xbf16>
    %220 = vector.shape_cast %216 : vector<8x128xbf16> to vector<1x8x128xbf16>
    tpu.vector_store %arg7[%217, %c0_74, %c0_75], %220 {strides = array<i32>} : memref<8x8x128xbf16, #tpu.memory_space<vmem>>, vector<1x8x128xbf16>,
    %c5_i32 = arith.constant 5 : i32
    %221 = arith.index_cast %c5_i32 : i32 to index
    %c0_76 = arith.constant 0 : index
    %c0_77 = arith.constant 0 : index
    %222 = vector.load %arg2[%221, %c0_76, %c0_77] : memref<8x8x512xbf16, #tpu.memory_space<vmem>>, vector<1x8x512xbf16>
    %223 = vector.shape_cast %222 : vector<1x8x512xbf16> to vector<8x512xbf16>
    %224 = arith.extf %223 : vector<8x512xbf16> to vector<8x512xf32>
    %225 = arith.truncf %215 : vector<8x128xf32> to vector<8x128xbf16>
    %cst_78 = arith.constant dense<0.000000e+00> : vector<8x512xf32>
    %226 = tpu.matmul %225, %3, %cst_78 {dimension_numbers = #tpu.dot_dimension_numbers<[1], [0], [0], [1], [0, 0, 1, 1], [], []>} : vector<8x128xbf16>, vector<128x512xbf16>, vector<8x512xf32> -> vector<8x512xf32>
    %227 = arith.addf %224, %226 : vector<8x512xf32>
    %228 = vector.extract_strided_slice %227 {offsets = [0, 0], sizes = [8, 128], strides = [1, 1]} : vector<8x512xf32> to vector<8x128xf32>
    %cst_79 = arith.constant 5.000000e-01 : f32
    %229 = vector.broadcast %cst_79 : f32 to vector<8x128xf32>
    %230 = arith.mulf %229, %228 : vector<8x128xf32>
    %231 = math.tanh %230 : vector<8x128xf32>
    %cst_80 = arith.constant 1.000000e+00 : f32
    %232 = vector.broadcast %cst_80 : f32 to vector<8x128xf32>
    %233 = arith.addf %231, %232 : vector<8x128xf32>
    %cst_81 = arith.constant 5.000000e-01 : f32
    %234 = vector.broadcast %cst_81 : f32 to vector<8x128xf32>
    %235 = arith.mulf %234, %233 : vector<8x128xf32>
    %236 = vector.extract_strided_slice %227 {offsets = [0, 128], sizes = [8, 128], strides = [1, 1]} : vector<8x512xf32> to vector<8x128xf32>
    %cst_82 = arith.constant 5.000000e-01 : f32
    %237 = vector.broadcast %cst_82 : f32 to vector<8x128xf32>
    %238 = arith.mulf %237, %236 : vector<8x128xf32>
    %239 = math.tanh %238 : vector<8x128xf32>
    %cst_83 = arith.constant 1.000000e+00 : f32
    %240 = vector.broadcast %cst_83 : f32 to vector<8x128xf32>
    %241 = arith.addf %239, %240 : vector<8x128xf32>
    %cst_84 = arith.constant 5.000000e-01 : f32
    %242 = vector.broadcast %cst_84 : f32 to vector<8x128xf32>
    %243 = arith.mulf %242, %241 : vector<8x128xf32>
    %244 = vector.extract_strided_slice %227 {offsets = [0, 256], sizes = [8, 128], strides = [1, 1]} : vector<8x512xf32> to vector<8x128xf32>
    %245 = math.tanh %244 : vector<8x128xf32>
    %246 = vector.extract_strided_slice %227 {offsets = [0, 384], sizes = [8, 128], strides = [1, 1]} : vector<8x512xf32> to vector<8x128xf32>
    %cst_85 = arith.constant 5.000000e-01 : f32
    %247 = vector.broadcast %cst_85 : f32 to vector<8x128xf32>
    %248 = arith.mulf %247, %246 : vector<8x128xf32>
    %249 = math.tanh %248 : vector<8x128xf32>
    %cst_86 = arith.constant 1.000000e+00 : f32
    %250 = vector.broadcast %cst_86 : f32 to vector<8x128xf32>
    %251 = arith.addf %249, %250 : vector<8x128xf32>
    %cst_87 = arith.constant 5.000000e-01 : f32
    %252 = vector.broadcast %cst_87 : f32 to vector<8x128xf32>
    %253 = arith.mulf %252, %251 : vector<8x128xf32>
    %254 = arith.mulf %243, %213 : vector<8x128xf32>
    %255 = arith.mulf %235, %245 : vector<8x128xf32>
    %256 = arith.addf %254, %255 : vector<8x128xf32>
    %257 = math.tanh %256 : vector<8x128xf32>
    %258 = arith.mulf %253, %257 : vector<8x128xf32>
    %259 = arith.truncf %258 : vector<8x128xf32> to vector<8x128xbf16>
    %260 = arith.index_cast %c5_i32 : i32 to index
    %c0_88 = arith.constant 0 : index
    %c0_89 = arith.constant 0 : index
    %261 = vector.load %arg7[%260, %c0_88, %c0_89] : memref<8x8x128xbf16, #tpu.memory_space<vmem>>, vector<1x8x128xbf16>
    %262 = vector.shape_cast %261 : vector<1x8x128xbf16> to vector<8x128xbf16>
    %263 = vector.shape_cast %259 : vector<8x128xbf16> to vector<1x8x128xbf16>
    tpu.vector_store %arg7[%260, %c0_88, %c0_89], %263 {strides = array<i32>} : memref<8x8x128xbf16, #tpu.memory_space<vmem>>, vector<1x8x128xbf16>,
    %c6_i32 = arith.constant 6 : i32
    %264 = arith.index_cast %c6_i32 : i32 to index
    %c0_90 = arith.constant 0 : index
    %c0_91 = arith.constant 0 : index
    %265 = vector.load %arg2[%264, %c0_90, %c0_91] : memref<8x8x512xbf16, #tpu.memory_space<vmem>>, vector<1x8x512xbf16>
    %266 = vector.shape_cast %265 : vector<1x8x512xbf16> to vector<8x512xbf16>
    %267 = arith.extf %266 : vector<8x512xbf16> to vector<8x512xf32>
    %268 = arith.truncf %258 : vector<8x128xf32> to vector<8x128xbf16>
    %cst_92 = arith.constant dense<0.000000e+00> : vector<8x512xf32>
    %269 = tpu.matmul %268, %3, %cst_92 {dimension_numbers = #tpu.dot_dimension_numbers<[1], [0], [0], [1], [0, 0, 1, 1], [], []>} : vector<8x128xbf16>, vector<128x512xbf16>, vector<8x512xf32> -> vector<8x512xf32>
    %270 = arith.addf %267, %269 : vector<8x512xf32>
    %271 = vector.extract_strided_slice %270 {offsets = [0, 0], sizes = [8, 128], strides = [1, 1]} : vector<8x512xf32> to vector<8x128xf32>
    %cst_93 = arith.constant 5.000000e-01 : f32
    %272 = vector.broadcast %cst_93 : f32 to vector<8x128xf32>
    %273 = arith.mulf %272, %271 : vector<8x128xf32>
    %274 = math.tanh %273 : vector<8x128xf32>
    %cst_94 = arith.constant 1.000000e+00 : f32
    %275 = vector.broadcast %cst_94 : f32 to vector<8x128xf32>
    %276 = arith.addf %274, %275 : vector<8x128xf32>
    %cst_95 = arith.constant 5.000000e-01 : f32
    %277 = vector.broadcast %cst_95 : f32 to vector<8x128xf32>
    %278 = arith.mulf %277, %276 : vector<8x128xf32>
    %279 = vector.extract_strided_slice %270 {offsets = [0, 128], sizes = [8, 128], strides = [1, 1]} : vector<8x512xf32> to vector<8x128xf32>
    %cst_96 = arith.constant 5.000000e-01 : f32
    %280 = vector.broadcast %cst_96 : f32 to vector<8x128xf32>
    %281 = arith.mulf %280, %279 : vector<8x128xf32>
    %282 = math.tanh %281 : vector<8x128xf32>
    %cst_97 = arith.constant 1.000000e+00 : f32
    %283 = vector.broadcast %cst_97 : f32 to vector<8x128xf32>
    %284 = arith.addf %282, %283 : vector<8x128xf32>
    %cst_98 = arith.constant 5.000000e-01 : f32
    %285 = vector.broadcast %cst_98 : f32 to vector<8x128xf32>
    %286 = arith.mulf %285, %284 : vector<8x128xf32>
    %287 = vector.extract_strided_slice %270 {offsets = [0, 256], sizes = [8, 128], strides = [1, 1]} : vector<8x512xf32> to vector<8x128xf32>
    %288 = math.tanh %287 : vector<8x128xf32>
    %289 = vector.extract_strided_slice %270 {offsets = [0, 384], sizes = [8, 128], strides = [1, 1]} : vector<8x512xf32> to vector<8x128xf32>
    %cst_99 = arith.constant 5.000000e-01 : f32
    %290 = vector.broadcast %cst_99 : f32 to vector<8x128xf32>
    %291 = arith.mulf %290, %289 : vector<8x128xf32>
    %292 = math.tanh %291 : vector<8x128xf32>
    %cst_100 = arith.constant 1.000000e+00 : f32
    %293 = vector.broadcast %cst_100 : f32 to vector<8x128xf32>
    %294 = arith.addf %292, %293 : vector<8x128xf32>
    %cst_101 = arith.constant 5.000000e-01 : f32
    %295 = vector.broadcast %cst_101 : f32 to vector<8x128xf32>
    %296 = arith.mulf %295, %294 : vector<8x128xf32>
    %297 = arith.mulf %286, %256 : vector<8x128xf32>
    %298 = arith.mulf %278, %288 : vector<8x128xf32>
    %299 = arith.addf %297, %298 : vector<8x128xf32>
    %300 = math.tanh %299 : vector<8x128xf32>
    %301 = arith.mulf %296, %300 : vector<8x128xf32>
    %302 = arith.truncf %301 : vector<8x128xf32> to vector<8x128xbf16>
    %303 = arith.index_cast %c6_i32 : i32 to index
    %c0_102 = arith.constant 0 : index
    %c0_103 = arith.constant 0 : index
    %304 = vector.load %arg7[%303, %c0_102, %c0_103] : memref<8x8x128xbf16, #tpu.memory_space<vmem>>, vector<1x8x128xbf16>
    %305 = vector.shape_cast %304 : vector<1x8x128xbf16> to vector<8x128xbf16>
    %306 = vector.shape_cast %302 : vector<8x128xbf16> to vector<1x8x128xbf16>
    tpu.vector_store %arg7[%303, %c0_102, %c0_103], %306 {strides = array<i32>} : memref<8x8x128xbf16, #tpu.memory_space<vmem>>, vector<1x8x128xbf16>,
    %c7_i32 = arith.constant 7 : i32
    %307 = arith.index_cast %c7_i32 : i32 to index
    %c0_104 = arith.constant 0 : index
    %c0_105 = arith.constant 0 : index
    %308 = vector.load %arg2[%307, %c0_104, %c0_105] : memref<8x8x512xbf16, #tpu.memory_space<vmem>>, vector<1x8x512xbf16>
    %309 = vector.shape_cast %308 : vector<1x8x512xbf16> to vector<8x512xbf16>
    %310 = arith.extf %309 : vector<8x512xbf16> to vector<8x512xf32>
    %311 = arith.truncf %301 : vector<8x128xf32> to vector<8x128xbf16>
    %cst_106 = arith.constant dense<0.000000e+00> : vector<8x512xf32>
    %312 = tpu.matmul %311, %3, %cst_106 {dimension_numbers = #tpu.dot_dimension_numbers<[1], [0], [0], [1], [0, 0, 1, 1], [], []>} : vector<8x128xbf16>, vector<128x512xbf16>, vector<8x512xf32> -> vector<8x512xf32>
    %313 = arith.addf %310, %312 : vector<8x512xf32>
    %314 = vector.extract_strided_slice %313 {offsets = [0, 0], sizes = [8, 128], strides = [1, 1]} : vector<8x512xf32> to vector<8x128xf32>
    %cst_107 = arith.constant 5.000000e-01 : f32
    %315 = vector.broadcast %cst_107 : f32 to vector<8x128xf32>
    %316 = arith.mulf %315, %314 : vector<8x128xf32>
    %317 = math.tanh %316 : vector<8x128xf32>
    %cst_108 = arith.constant 1.000000e+00 : f32
    %318 = vector.broadcast %cst_108 : f32 to vector<8x128xf32>
    %319 = arith.addf %317, %318 : vector<8x128xf32>
    %cst_109 = arith.constant 5.000000e-01 : f32
    %320 = vector.broadcast %cst_109 : f32 to vector<8x128xf32>
    %321 = arith.mulf %320, %319 : vector<8x128xf32>
    %322 = vector.extract_strided_slice %313 {offsets = [0, 128], sizes = [8, 128], strides = [1, 1]} : vector<8x512xf32> to vector<8x128xf32>
    %cst_110 = arith.constant 5.000000e-01 : f32
    %323 = vector.broadcast %cst_110 : f32 to vector<8x128xf32>
    %324 = arith.mulf %323, %322 : vector<8x128xf32>
    %325 = math.tanh %324 : vector<8x128xf32>
    %cst_111 = arith.constant 1.000000e+00 : f32
    %326 = vector.broadcast %cst_111 : f32 to vector<8x128xf32>
    %327 = arith.addf %325, %326 : vector<8x128xf32>
    %cst_112 = arith.constant 5.000000e-01 : f32
    %328 = vector.broadcast %cst_112 : f32 to vector<8x128xf32>
    %329 = arith.mulf %328, %327 : vector<8x128xf32>
    %330 = vector.extract_strided_slice %313 {offsets = [0, 256], sizes = [8, 128], strides = [1, 1]} : vector<8x512xf32> to vector<8x128xf32>
    %331 = math.tanh %330 : vector<8x128xf32>
    %332 = vector.extract_strided_slice %313 {offsets = [0, 384], sizes = [8, 128], strides = [1, 1]} : vector<8x512xf32> to vector<8x128xf32>
    %cst_113 = arith.constant 5.000000e-01 : f32
    %333 = vector.broadcast %cst_113 : f32 to vector<8x128xf32>
    %334 = arith.mulf %333, %332 : vector<8x128xf32>
    %335 = math.tanh %334 : vector<8x128xf32>
    %cst_114 = arith.constant 1.000000e+00 : f32
    %336 = vector.broadcast %cst_114 : f32 to vector<8x128xf32>
    %337 = arith.addf %335, %336 : vector<8x128xf32>
    %cst_115 = arith.constant 5.000000e-01 : f32
    %338 = vector.broadcast %cst_115 : f32 to vector<8x128xf32>
    %339 = arith.mulf %338, %337 : vector<8x128xf32>
    %340 = arith.mulf %329, %299 : vector<8x128xf32>
    %341 = arith.mulf %321, %331 : vector<8x128xf32>
    %342 = arith.addf %340, %341 : vector<8x128xf32>
    %343 = math.tanh %342 : vector<8x128xf32>
    %344 = arith.mulf %339, %343 : vector<8x128xf32>
    %345 = arith.truncf %344 : vector<8x128xf32> to vector<8x128xbf16>
    %346 = arith.index_cast %c7_i32 : i32 to index
    %c0_116 = arith.constant 0 : index
    %c0_117 = arith.constant 0 : index
    %347 = vector.load %arg7[%346, %c0_116, %c0_117] : memref<8x8x128xbf16, #tpu.memory_space<vmem>>, vector<1x8x128xbf16>
    %348 = vector.shape_cast %347 : vector<1x8x128xbf16> to vector<8x128xbf16>
    %349 = vector.shape_cast %345 : vector<8x128xbf16> to vector<1x8x128xbf16>
    tpu.vector_store %arg7[%346, %c0_116, %c0_117], %349 {strides = array<i32>} : memref<8x8x128xbf16, #tpu.memory_space<vmem>>, vector<1x8x128xbf16>,
    %c8_i32 = arith.constant 8 : i32
    %c0_118 = arith.constant 0 : index
    %c0_119 = arith.constant 0 : index
    %350 = vector.load %arg5[%c0_118, %c0_119] : memref<8x128xf32, #tpu.memory_space<vmem>>, vector<8x128xf32>
    tpu.vector_store %arg5[%c0_118, %c0_119], %344 {strides = array<i32>} : memref<8x128xf32, #tpu.memory_space<vmem>>, vector<8x128xf32>,
    %c0_120 = arith.constant 0 : index
    %c0_121 = arith.constant 0 : index
    %351 = vector.load %arg6[%c0_120, %c0_121] : memref<8x128xf32, #tpu.memory_space<vmem>>, vector<8x128xf32>
    tpu.vector_store %arg6[%c0_120, %c0_121], %342 {strides = array<i32>} : memref<8x128xf32, #tpu.memory_space<vmem>>, vector<8x128xf32>,
    %c0_122 = arith.constant 0 : index
    %c0_123 = arith.constant 0 : index
    %c0_124 = arith.constant 0 : index
    %352 = vector.load %arg7[%c0_122, %c0_123, %c0_124] : memref<8x8x128xbf16, #tpu.memory_space<vmem>>, vector<1x8x128xbf16>
    %353 = vector.shape_cast %352 : vector<1x8x128xbf16> to vector<8x128xbf16>
    %c0_125 = arith.constant 0 : index
    %c0_126 = arith.constant 0 : index
    %c0_127 = arith.constant 0 : index
    %354 = vector.load %arg4[%c0_125, %c0_126, %c0_127] : memref<8x8x128xbf16, #tpu.memory_space<vmem>>, vector<8x1x128xbf16>
    %355 = vector.shape_cast %354 : vector<8x1x128xbf16> to vector<8x128xbf16>
    %356 = vector.shape_cast %353 : vector<8x128xbf16> to vector<8x1x128xbf16>
    tpu.vector_store %arg4[%c0_125, %c0_126, %c0_127], %356 {strides = array<i32>} : memref<8x8x128xbf16, #tpu.memory_space<vmem>>, vector<8x1x128xbf16>,
    %c1 = arith.constant 1 : index
    %c0_128 = arith.constant 0 : index
    %c0_129 = arith.constant 0 : index
    %357 = vector.load %arg7[%c1, %c0_128, %c0_129] : memref<8x8x128xbf16, #tpu.memory_space<vmem>>, vector<1x8x128xbf16>
    %358 = vector.shape_cast %357 : vector<1x8x128xbf16> to vector<8x128xbf16>
    %c0_130 = arith.constant 0 : index
    %c1_131 = arith.constant 1 : index
    %c0_132 = arith.constant 0 : index
    %359 = vector.load %arg4[%c0_130, %c1_131, %c0_132] : memref<8x8x128xbf16, #tpu.memory_space<vmem>>, vector<8x1x128xbf16>
    %360 = vector.shape_cast %359 : vector<8x1x128xbf16> to vector<8x128xbf16>
    %361 = vector.shape_cast %358 : vector<8x128xbf16> to vector<8x1x128xbf16>
    tpu.vector_store %arg4[%c0_130, %c1_131, %c0_132], %361 {strides = array<i32>} : memref<8x8x128xbf16, #tpu.memory_space<vmem>>, vector<8x1x128xbf16>,
    %c2 = arith.constant 2 : index
    %c0_133 = arith.constant 0 : index
    %c0_134 = arith.constant 0 : index
    %362 = vector.load %arg7[%c2, %c0_133, %c0_134] : memref<8x8x128xbf16, #tpu.memory_space<vmem>>, vector<1x8x128xbf16>
    %363 = vector.shape_cast %362 : vector<1x8x128xbf16> to vector<8x128xbf16>
    %c0_135 = arith.constant 0 : index
    %c2_136 = arith.constant 2 : index
    %c0_137 = arith.constant 0 : index
    %364 = vector.load %arg4[%c0_135, %c2_136, %c0_137] : memref<8x8x128xbf16, #tpu.memory_space<vmem>>, vector<8x1x128xbf16>
    %365 = vector.shape_cast %364 : vector<8x1x128xbf16> to vector<8x128xbf16>
    %366 = vector.shape_cast %363 : vector<8x128xbf16> to vector<8x1x128xbf16>
    tpu.vector_store %arg4[%c0_135, %c2_136, %c0_137], %366 {strides = array<i32>} : memref<8x8x128xbf16, #tpu.memory_space<vmem>>, vector<8x1x128xbf16>,
    %c3 = arith.constant 3 : index
    %c0_138 = arith.constant 0 : index
    %c0_139 = arith.constant 0 : index
    %367 = vector.load %arg7[%c3, %c0_138, %c0_139] : memref<8x8x128xbf16, #tpu.memory_space<vmem>>, vector<1x8x128xbf16>
    %368 = vector.shape_cast %367 : vector<1x8x128xbf16> to vector<8x128xbf16>
    %c0_140 = arith.constant 0 : index
    %c3_141 = arith.constant 3 : index
    %c0_142 = arith.constant 0 : index
    %369 = vector.load %arg4[%c0_140, %c3_141, %c0_142] : memref<8x8x128xbf16, #tpu.memory_space<vmem>>, vector<8x1x128xbf16>
    %370 = vector.shape_cast %369 : vector<8x1x128xbf16> to vector<8x128xbf16>
    %371 = vector.shape_cast %368 : vector<8x128xbf16> to vector<8x1x128xbf16>
    tpu.vector_store %arg4[%c0_140, %c3_141, %c0_142], %371 {strides = array<i32>} : memref<8x8x128xbf16, #tpu.memory_space<vmem>>, vector<8x1x128xbf16>,
    %c4 = arith.constant 4 : index
    %c0_143 = arith.constant 0 : index
    %c0_144 = arith.constant 0 : index
    %372 = vector.load %arg7[%c4, %c0_143, %c0_144] : memref<8x8x128xbf16, #tpu.memory_space<vmem>>, vector<1x8x128xbf16>
    %373 = vector.shape_cast %372 : vector<1x8x128xbf16> to vector<8x128xbf16>
    %c0_145 = arith.constant 0 : index
    %c4_146 = arith.constant 4 : index
    %c0_147 = arith.constant 0 : index
    %374 = vector.load %arg4[%c0_145, %c4_146, %c0_147] : memref<8x8x128xbf16, #tpu.memory_space<vmem>>, vector<8x1x128xbf16>
    %375 = vector.shape_cast %374 : vector<8x1x128xbf16> to vector<8x128xbf16>
    %376 = vector.shape_cast %373 : vector<8x128xbf16> to vector<8x1x128xbf16>
    tpu.vector_store %arg4[%c0_145, %c4_146, %c0_147], %376 {strides = array<i32>} : memref<8x8x128xbf16, #tpu.memory_space<vmem>>, vector<8x1x128xbf16>,
    %c5 = arith.constant 5 : index
    %c0_148 = arith.constant 0 : index
    %c0_149 = arith.constant 0 : index
    %377 = vector.load %arg7[%c5, %c0_148, %c0_149] : memref<8x8x128xbf16, #tpu.memory_space<vmem>>, vector<1x8x128xbf16>
    %378 = vector.shape_cast %377 : vector<1x8x128xbf16> to vector<8x128xbf16>
    %c0_150 = arith.constant 0 : index
    %c5_151 = arith.constant 5 : index
    %c0_152 = arith.constant 0 : index
    %379 = vector.load %arg4[%c0_150, %c5_151, %c0_152] : memref<8x8x128xbf16, #tpu.memory_space<vmem>>, vector<8x1x128xbf16>
    %380 = vector.shape_cast %379 : vector<8x1x128xbf16> to vector<8x128xbf16>
    %381 = vector.shape_cast %378 : vector<8x128xbf16> to vector<8x1x128xbf16>
    tpu.vector_store %arg4[%c0_150, %c5_151, %c0_152], %381 {strides = array<i32>} : memref<8x8x128xbf16, #tpu.memory_space<vmem>>, vector<8x1x128xbf16>,
    %c6 = arith.constant 6 : index
    %c0_153 = arith.constant 0 : index
    %c0_154 = arith.constant 0 : index
    %382 = vector.load %arg7[%c6, %c0_153, %c0_154] : memref<8x8x128xbf16, #tpu.memory_space<vmem>>, vector<1x8x128xbf16>
    %383 = vector.shape_cast %382 : vector<1x8x128xbf16> to vector<8x128xbf16>
    %c0_155 = arith.constant 0 : index
    %c6_156 = arith.constant 6 : index
    %c0_157 = arith.constant 0 : index
    %384 = vector.load %arg4[%c0_155, %c6_156, %c0_157] : memref<8x8x128xbf16, #tpu.memory_space<vmem>>, vector<8x1x128xbf16>
    %385 = vector.shape_cast %384 : vector<8x1x128xbf16> to vector<8x128xbf16>
    %386 = vector.shape_cast %383 : vector<8x128xbf16> to vector<8x1x128xbf16>
    tpu.vector_store %arg4[%c0_155, %c6_156, %c0_157], %386 {strides = array<i32>} : memref<8x8x128xbf16, #tpu.memory_space<vmem>>, vector<8x1x128xbf16>,
    %c7 = arith.constant 7 : index
    %c0_158 = arith.constant 0 : index
    %c0_159 = arith.constant 0 : index
    %387 = vector.load %arg7[%c7, %c0_158, %c0_159] : memref<8x8x128xbf16, #tpu.memory_space<vmem>>, vector<1x8x128xbf16>
    %388 = vector.shape_cast %387 : vector<1x8x128xbf16> to vector<8x128xbf16>
    %c0_160 = arith.constant 0 : index
    %c7_161 = arith.constant 7 : index
    %c0_162 = arith.constant 0 : index
    %389 = vector.load %arg4[%c0_160, %c7_161, %c0_162] : memref<8x8x128xbf16, #tpu.memory_space<vmem>>, vector<8x1x128xbf16>
    %390 = vector.shape_cast %389 : vector<8x1x128xbf16> to vector<8x128xbf16>
    %391 = vector.shape_cast %388 : vector<8x128xbf16> to vector<8x1x128xbf16>
    tpu.vector_store %arg4[%c0_160, %c7_161, %c0_162], %391 {strides = array<i32>} : memref<8x8x128xbf16, #tpu.memory_space<vmem>>, vector<8x1x128xbf16>,
    return
  }
  func.func @transform_0(%arg0: i32, %arg1: i32) -> (i32, i32, i32) {
    %c0_i32 = arith.constant 0 : i32
    %c0_i32_0 = arith.constant 0 : i32
    return %arg1, %arg0, %c0_i32 : i32, i32, i32
  }
  func.func @transform_1(%arg0: i32, %arg1: i32) -> (i32, i32) {
    %c0_i32 = arith.constant 0 : i32
    %c0_i32_0 = arith.constant 0 : i32
    %c0_i32_1 = arith.constant 0 : i32
    return %c0_i32, %c0_i32_0 : i32, i32
  }
  func.func @transform_2(%arg0: i32, %arg1: i32) -> (i32, i32, i32) {
    %c0_i32 = arith.constant 0 : i32
    %c0_i32_0 = arith.constant 0 : i32
    return %arg0, %arg1, %c0_i32 : i32, i32, i32
  }
}

</mosaic_0001>

<llo_original>
// kernel: lstm_language_model_forward.3
$region0: #{lstm_language_model_forward.3}
  #allocation0 [shape = 'u32[]', space=smem, size = 0x4, offset = 0x4, fixed_abs, tag = 'smem constant byte address 0x4 - core index']
  #allocation1 [shape = 'u32[72,128]{1,0:T(1,128)}', space=vmem, size = 0x9000, scoped, tag = 'internal scratch']
  %s0 = inlined_call_operand.vmem [shape: bf16[8,8,128], index: 0, kind: input, shape index: {}]
  %s1 = inlined_call_operand.vmem [shape: bf16[128,128], index: 1, kind: input, shape index: {}]
  %s2 = inlined_call_operand.vmem [shape: f32[1,128], index: 2, kind: input, shape index: {}]
  %s3 = inlined_call_operand.vmem [shape: f32[8,8,128], index: 3, kind: output, shape index: {}]
  %s4 = sld [smem:[#allocation0]]
  $region22: #{lstm_language_model_forward.3} parent=0
    _
  %s6 = ssub.s32 1, %s4
  %s7 = scalar_select 0, %s6, %s4
  // Predicated region
  $region2: #{lstm_language_model_forward.3} parent=0 // pred_check
    _
  $region3: #{lstm_language_model_forward.3} parent=0 // pred_check_branch
    %9 = sbr.rel (0) target = $region5
  $region4: #{lstm_language_model_forward.3} parent=0 // pred_region
    _
  $region5: #{lstm_language_model_forward.3} parent=0 // pred_fallthru
    _
  // Predicated region
  $region6: #{lstm_language_model_forward.3} parent=0 // pred_check
    _
  $region7: #{lstm_language_model_forward.3} parent=0 // pred_check_branch
    %11 = sbr.rel (0) target = $region9
  $region8: #{lstm_language_model_forward.3} parent=0 // pred_region
    _
  $region9: #{lstm_language_model_forward.3} parent=0 // pred_fallthru
    _
  // Predicated region
  $region10: #{lstm_language_model_forward.3} parent=0 // pred_check
    _
  $region11: #{lstm_language_model_forward.3} parent=0 // pred_check_branch
    %13 = sbr.rel (0) target = $region13
  $region12: #{lstm_language_model_forward.3} parent=0 // pred_region
    _
  $region13: #{lstm_language_model_forward.3} parent=0 // pred_fallthru
    _
  %v14 = vld [vmem:[%s0] sm:$0xf]
  %v15 = vld [vmem:[%s0 + $0x4] sm:$0xf]
  %v16 = vld [vmem:[%s0 + $0x8] sm:$0xf]
  %v17 = vld [vmem:[%s0 + $0xc] sm:$0xf]
  %v18 = vld [vmem:[%s0 + $0x10] sm:$0xf]
  %v19 = vld [vmem:[%s0 + $0x14] sm:$0xf]
  %v20 = vld [vmem:[%s0 + $0x18] sm:$0xf]
  %v21 = vld [vmem:[%s0 + $0x1c] sm:$0xf]
  %v22 = vld [vmem:[%s1] sm:$0xf]
  %v23 = vld [vmem:[%s1 + $0x4] sm:$0xf]
  %v24 = vld [vmem:[%s1 + $0x8] sm:$0xf]
  %v25 = vld [vmem:[%s1 + $0xc] sm:$0xf]
  %v26 = vld [vmem:[%s1 + $0x10] sm:$0xf]
  %v27 = vld [vmem:[%s1 + $0x14] sm:$0xf]
  %v28 = vld [vmem:[%s1 + $0x18] sm:$0xf]
  %v29 = vld [vmem:[%s1 + $0x1c] sm:$0xf]
  %v30 = vld [vmem:[%s1 + $0x20] sm:$0xf]
  %v31 = vld [vmem:[%s1 + $0x24] sm:$0xf]
  %v32 = vld [vmem:[%s1 + $0x28] sm:$0xf]
  %v33 = vld [vmem:[%s1 + $0x2c] sm:$0xf]
  %v34 = vld [vmem:[%s1 + $0x30] sm:$0xf]
  %v35 = vld [vmem:[%s1 + $0x34] sm:$0xf]
  %v36 = vld [vmem:[%s1 + $0x38] sm:$0xf]
  %v37 = vld [vmem:[%s1 + $0x3c] sm:$0xf]
  %v38 = vld [vmem:[%s2] sm:$0x1]
  %v40 = vperm.slane %v38, 0
  %v50 = vunpack.c.l.b16 %v14
  %v51 = vunpack.c.l.b16 %v15
  %v52 = vunpack.c.l.b16 %v16
  %v53 = vunpack.c.l.b16 %v17
  %v54 = vunpack.c.l.b16 %v18
  %v55 = vunpack.c.l.b16 %v19
  %v56 = vunpack.c.l.b16 %v20
  %v57 = vunpack.c.l.b16 %v21
  %v58 = vpack.c.b16 %v51, %v50
  %v59 = vpack.c.b16 %v53, %v52
  %v60 = vpack.c.b16 %v55, %v54
  %v61 = vpack.c.b16 %v57, %v56
  %v82 = vunpack.c.l.b16 %v22
  %v83 = vunpack.c.l.b16 %v23
  %v84 = vunpack.c.l.b16 %v24
  %v85 = vunpack.c.l.b16 %v25
  %v86 = vunpack.c.l.b16 %v26
  %v87 = vunpack.c.l.b16 %v27
  %v88 = vunpack.c.l.b16 %v28
  %v89 = vunpack.c.l.b16 %v29
  %v90 = vunpack.c.l.b16 %v30
  %v91 = vunpack.c.l.b16 %v31
  %v92 = vunpack.c.l.b16 %v32
  %v93 = vunpack.c.l.b16 %v33
  %v94 = vunpack.c.l.b16 %v34
  %v95 = vunpack.c.l.b16 %v35
  %v96 = vunpack.c.l.b16 %v36
  %v97 = vunpack.c.l.b16 %v37
  %v98 = vpack.c.b16 %v83, %v82
  %v99 = vpack.c.b16 %v85, %v84
  %v100 = vpack.c.b16 %v87, %v86
  %v101 = vpack.c.b16 %v89, %v88
  %v102 = vpack.c.b16 %v91, %v90
  %v103 = vpack.c.b16 %v93, %v92
  %v104 = vpack.c.b16 %v95, %v94
  %v105 = vpack.c.b16 %v97, %v96
  %114 = vmatpush.bf16.msra.mxu0 %v105
  %115 = vmatpush.bf16.msra.mxu0 %v104
  %116 = vmatpush.bf16.msra.mxu0 %v103
  %117 = vmatpush.bf16.msra.mxu0 %v102
  %118 = vmatpush.bf16.msra.mxu0 %v101
  %119 = vmatpush.bf16.msra.mxu0 %v100
  %120 = vmatpush.bf16.msra.mxu0 %v99
  %121 = vmatpush.bf16.msra.mxu0 %v98
  %122 = vmatmul.bf16.gmra.mxu0 %v58
  %v123 = vpop.f32.mrf.mxu0
  %v124 = vadd.f32 %v40, %v123
  %v125 = vpop.f32.mrf.mxu0
  %v126 = vadd.f32 %v40, %v125
  %127 = vmatmul.bf16.gmra.mxu0 %v59
  %v128 = vpop.f32.mrf.mxu0
  %v129 = vadd.f32 %v40, %v128
  %v130 = vpop.f32.mrf.mxu0
  %v131 = vadd.f32 %v40, %v130
  %132 = vmatmul.bf16.gmra.mxu0 %v60
  %v133 = vpop.f32.mrf.mxu0
  %v134 = vadd.f32 %v40, %v133
  %v135 = vpop.f32.mrf.mxu0
  %v136 = vadd.f32 %v40, %v135
  %137 = vmatmul.bf16.gmra.mxu0 %v61
  %v138 = vpop.f32.mrf.mxu0
  %v139 = vadd.f32 %v40, %v138
  %v140 = vpop.f32.mrf.mxu0
  %v141 = vadd.f32 %v40, %v140
  %142 = vdwg.mxu0
  %143 = vst [vmem:[%s3] sm:$0xff] %v124
  %144 = vst [vmem:[%s3 + $0x8] sm:$0xff] %v126
  %145 = vst [vmem:[%s3 + $0x10] sm:$0xff] %v129
  %146 = vst [vmem:[%s3 + $0x18] sm:$0xff] %v131
  %147 = vst [vmem:[%s3 + $0x20] sm:$0xff] %v134
  %148 = vst [vmem:[%s3 + $0x28] sm:$0xff] %v136
  %149 = vst [vmem:[%s3 + $0x30] sm:$0xff] %v139
  %150 = vst [vmem:[%s3 + $0x38] sm:$0xff] %v141
  // Predicated region
  $region14: #{lstm_language_model_forward.3} parent=0 // pred_check
    _
  $region15: #{lstm_language_model_forward.3} parent=0 // pred_check_branch
    %152 = sbr.rel (0) target = $region17
  $region16: #{lstm_language_model_forward.3} parent=0 // pred_region
    _
  $region17: #{lstm_language_model_forward.3} parent=0 // pred_fallthru
    _
  // Predicated region
  $region18: #{lstm_language_model_forward.3} parent=0 // pred_check
    _
  $region19: #{lstm_language_model_forward.3} parent=0 // pred_check_branch
    %154 = sbr.rel (0) target = $region21
  $region20: #{lstm_language_model_forward.3} parent=0 // pred_region
    _
  $region21: #{lstm_language_model_forward.3} parent=0 // pred_fallthru
    _

// kernel: lstm_language_model_forward.2
$region0: #{lstm_language_model_forward.2}
  #allocation0 [shape = 'u32[]', space=smem, size = 0x4, offset = 0x4, fixed_abs, tag = 'smem constant byte address 0x4 - core index']
  #allocation1 [shape = 'u32[72,128]{1,0:T(1,128)}', space=vmem, size = 0x9000, scoped, tag = 'internal scratch']
  #allocation2 [shape = 'f32[8,128]{1,0:T(8,128)}', space=vmem, size = 0x1000, scoped, tag = 'scratch operand']
  #allocation3 [shape = 'f32[8,128]{1,0:T(8,128)}', space=vmem, size = 0x1000, scoped, tag = 'scratch operand']
  #allocation4 [shape = 'bf16[8,8,128]{2,1,0:T(8,128)(2,1)}', space=vmem, size = 0x4000, scoped, tag = 'scratch operand']
  %s0 = inlined_call_operand.vmem [shape: bf16[8,8,512], index: 0, kind: input, shape index: {}]
  %s1 = inlined_call_operand.vmem [shape: bf16[128,512], index: 1, kind: input, shape index: {}]
  %s2 = inlined_call_operand.vmem [shape: bf16[8,8,128], index: 2, kind: output, shape index: {}]
  %s3 = sld [smem:[#allocation0]]
  $region22: #{lstm_language_model_forward.2} parent=0
    _
  %s5 = ssub.s32 1, %s3
  %s6 = scalar_select 0, %s5, %s3
  // Predicated region
  $region2: #{lstm_language_model_forward.2} parent=0 // pred_check
    _
  $region3: #{lstm_language_model_forward.2} parent=0 // pred_check_branch
    %8 = sbr.rel (0) target = $region5
  $region4: #{lstm_language_model_forward.2} parent=0 // pred_region
    _
  $region5: #{lstm_language_model_forward.2} parent=0 // pred_fallthru
    _
  // Predicated region
  $region6: #{lstm_language_model_forward.2} parent=0 // pred_check
    _
  $region7: #{lstm_language_model_forward.2} parent=0 // pred_check_branch
    %10 = sbr.rel (0) target = $region9
  $region8: #{lstm_language_model_forward.2} parent=0 // pred_region
    _
  $region9: #{lstm_language_model_forward.2} parent=0 // pred_fallthru
    _
  %p11 = scmp.eq.s32.totalorder 0, 0
  // Predicated region
  $region10: #{lstm_language_model_forward.2} parent=0 // pred_check
    %p12 = pneg %p11
  $region11: #{lstm_language_model_forward.2} parent=0 // pred_check_branch
    %14 = sbr.rel (%p12) target = $region13
  $region12: #{lstm_language_model_forward.2} parent=0 // pred_region
    %15 = vst [vmem:[#allocation2] sm:$0xff] 0.0
    %16 = vst [vmem:[#allocation3] sm:$0xff] 0.0
  $region13: #{lstm_language_model_forward.2} parent=0 // pred_fallthru
    _
  %v17 = vld [vmem:[%s1] sm:$0xff]
  %v18 = vld [vmem:[%s1 + $0x8] sm:$0xff]
  %v19 = vld [vmem:[%s1 + $0x10] sm:$0xff]
  %v20 = vld [vmem:[%s1 + $0x18] sm:$0xff]
  %v21 = vld [vmem:[%s1 + $0x20] sm:$0xff]
  %v22 = vld [vmem:[%s1 + $0x28] sm:$0xff]
  %v23 = vld [vmem:[%s1 + $0x30] sm:$0xff]
  %v24 = vld [vmem:[%s1 + $0x38] sm:$0xff]
  %v25 = vld [vmem:[%s1 + $0x40] sm:$0xff]
  %v26 = vld [vmem:[%s1 + $0x48] sm:$0xff]
  %v27 = vld [vmem:[%s1 + $0x50] sm:$0xff]
  %v28 = vld [vmem:[%s1 + $0x58] sm:$0xff]
  %v29 = vld [vmem:[%s1 + $0x60] sm:$0xff]
  %v30 = vld [vmem:[%s1 + $0x68] sm:$0xff]
  %v31 = vld [vmem:[%s1 + $0x70] sm:$0xff]
  %v32 = vld [vmem:[%s1 + $0x78] sm:$0xff]
  %v33 = vld [vmem:[%s1 + $0x80] sm:$0xff]
  %v34 = vld [vmem:[%s1 + $0x88] sm:$0xff]
  %v35 = vld [vmem:[%s1 + $0x90] sm:$0xff]
  %v36 = vld [vmem:[%s1 + $0x98] sm:$0xff]
  %v37 = vld [vmem:[%s1 + $0xa0] sm:$0xff]
  %v38 = vld [vmem:[%s1 + $0xa8] sm:$0xff]
  %v39 = vld [vmem:[%s1 + $0xb0] sm:$0xff]
  %v40 = vld [vmem:[%s1 + $0xb8] sm:$0xff]
  %v41 = vld [vmem:[%s1 + $0xc0] sm:$0xff]
  %v42 = vld [vmem:[%s1 + $0xc8] sm:$0xff]
  %v43 = vld [vmem:[%s1 + $0xd0] sm:$0xff]
  %v44 = vld [vmem:[%s1 + $0xd8] sm:$0xff]
  %v45 = vld [vmem:[%s1 + $0xe0] sm:$0xff]
  %v46 = vld [vmem:[%s1 + $0xe8] sm:$0xff]
  %v47 = vld [vmem:[%s1 + $0xf0] sm:$0xff]
  %v48 = vld [vmem:[%s1 + $0xf8] sm:$0xff]
  %v49 = vld [vmem:[#allocation2] sm:$0xff]
  %v50 = vld [vmem:[#allocation3] sm:$0xff]
  %v51 = vld [vmem:[%s0] sm:$0xff]
  %v52 = vld [vmem:[%s0 + $0x8] sm:$0xff]
  %v53 = vunpack.c.l.bf16 %v51
  %v54 = vunpack.c.h.bf16 %v51
  %v55 = vunpack.c.l.bf16 %v52
  %v56 = vunpack.c.h.bf16 %v52
  %v57 = vpack.c.bf16 %v49, %v49
  %v90 = vunpack.c.l.b16 %v17
  %v91 = vunpack.c.h.b16 %v17
  %v92 = vunpack.c.l.b16 %v18
  %v93 = vunpack.c.h.b16 %v18
  %v94 = vunpack.c.l.b16 %v19
  %v95 = vunpack.c.h.b16 %v19
  %v96 = vunpack.c.l.b16 %v20
  %v97 = vunpack.c.h.b16 %v20
  %v98 = vunpack.c.l.b16 %v21
  %v99 = vunpack.c.h.b16 %v21
  %v100 = vunpack.c.l.b16 %v22
  %v101 = vunpack.c.h.b16 %v22
  %v102 = vunpack.c.l.b16 %v23
  %v103 = vunpack.c.h.b16 %v23
  %v104 = vunpack.c.l.b16 %v24
  %v105 = vunpack.c.h.b16 %v24
  %v106 = vunpack.c.l.b16 %v25
  %v107 = vunpack.c.h.b16 %v25
  %v108 = vunpack.c.l.b16 %v26
  %v109 = vunpack.c.h.b16 %v26
  %v110 = vunpack.c.l.b16 %v27
  %v111 = vunpack.c.h.b16 %v27
  %v112 = vunpack.c.l.b16 %v28
  %v113 = vunpack.c.h.b16 %v28
  %v114 = vunpack.c.l.b16 %v29
  %v115 = vunpack.c.h.b16 %v29
  %v116 = vunpack.c.l.b16 %v30
  %v117 = vunpack.c.h.b16 %v30
  %v118 = vunpack.c.l.b16 %v31
  %v119 = vunpack.c.h.b16 %v31
  %v120 = vunpack.c.l.b16 %v32
  %v121 = vunpack.c.h.b16 %v32
  %v122 = vunpack.c.l.b16 %v33
  %v123 = vunpack.c.h.b16 %v33
  %v124 = vunpack.c.l.b16 %v34
  %v125 = vunpack.c.h.b16 %v34
  %v126 = vunpack.c.l.b16 %v35
  %v127 = vunpack.c.h.b16 %v35
  %v128 = vunpack.c.l.b16 %v36
  %v129 = vunpack.c.h.b16 %v36
  %v130 = vunpack.c.l.b16 %v37
  %v131 = vunpack.c.h.b16 %v37
  %v132 = vunpack.c.l.b16 %v38
  %v133 = vunpack.c.h.b16 %v38
  %v134 = vunpack.c.l.b16 %v39
  %v135 = vunpack.c.h.b16 %v39
  %v136 = vunpack.c.l.b16 %v40
  %v137 = vunpack.c.h.b16 %v40
  %v138 = vunpack.c.l.b16 %v41
  %v139 = vunpack.c.h.b16 %v41
  %v140 = vunpack.c.l.b16 %v42
  %v141 = vunpack.c.h.b16 %v42
  %v142 = vunpack.c.l.b16 %v43
  %v143 = vunpack.c.h.b16 %v43
  %v144 = vunpack.c.l.b16 %v44
  %v145 = vunpack.c.h.b16 %v44
  %v146 = vunpack.c.l.b16 %v45
  %v147 = vunpack.c.h.b16 %v45
  %v148 = vunpack.c.l.b16 %v46
  %v149 = vunpack.c.h.b16 %v46
  %v150 = vunpack.c.l.b16 %v47
  %v151 = vunpack.c.h.b16 %v47
  %v152 = vunpack.c.l.b16 %v48
  %v153 = vunpack.c.h.b16 %v48
  %v154 = vpack.c.b16 %v94, %v90
  %v155 = vpack.c.b16 %v95, %v91
  %v156 = vpack.c.b16 %v96, %v92
  %v157 = vpack.c.b16 %v97, %v93
  %v158 = vpack.c.b16 %v102, %v98
  %v159 = vpack.c.b16 %v103, %v99
  %v160 = vpack.c.b16 %v104, %v100
  %v161 = vpack.c.b16 %v105, %v101
  %v162 = vpack.c.b16 %v110, %v106
  %v163 = vpack.c.b16 %v111, %v107
  %v164 = vpack.c.b16 %v112, %v108
  %v165 = vpack.c.b16 %v113, %v109
  %v166 = vpack.c.b16 %v118, %v114
  %v167 = vpack.c.b16 %v119, %v115
  %v168 = vpack.c.b16 %v120, %v116
  %v169 = vpack.c.b16 %v121, %v117
  %v170 = vpack.c.b16 %v126, %v122
  %v171 = vpack.c.b16 %v127, %v123
  %v172 = vpack.c.b16 %v128, %v124
  %v173 = vpack.c.b16 %v129, %v125
  %v174 = vpack.c.b16 %v134, %v130
  %v175 = vpack.c.b16 %v135, %v131
  %v176 = vpack.c.b16 %v136, %v132
  %v177 = vpack.c.b16 %v137, %v133
  %v178 = vpack.c.b16 %v142, %v138
  %v179 = vpack.c.b16 %v143, %v139
  %v180 = vpack.c.b16 %v144, %v140
  %v181 = vpack.c.b16 %v145, %v141
  %v182 = vpack.c.b16 %v150, %v146
  %v183 = vpack.c.b16 %v151, %v147
  %v184 = vpack.c.b16 %v152, %v148
  %v185 = vpack.c.b16 %v153, %v149
  %218 = vmatpush.bf16.msra.mxu0 %v182
  %219 = vmatpush.bf16.msra.mxu0 %v178
  %220 = vmatpush.bf16.msra.mxu0 %v174
  %221 = vmatpush.bf16.msra.mxu0 %v170
  %222 = vmatpush.bf16.msra.mxu0 %v166
  %223 = vmatpush.bf16.msra.mxu0 %v162
  %224 = vmatpush.bf16.msra.mxu0 %v158
  %225 = vmatpush.bf16.msra.mxu0 %v154
  %226 = vmatmul.bf16.gmra.mxu0 %v57
  %v227 = vpop.f32.mrf.mxu0
  %v228 = vadd.f32 0.0, %v227
  %v229 = vpop.f32.mrf.mxu0
  %230 = vdwg.mxu0
  %231 = vmatpush.bf16.msra.mxu0 %v183
  %232 = vmatpush.bf16.msra.mxu0 %v179
  %233 = vmatpush.bf16.msra.mxu0 %v175
  %234 = vmatpush.bf16.msra.mxu0 %v171
  %235 = vmatpush.bf16.msra.mxu0 %v167
  %236 = vmatpush.bf16.msra.mxu0 %v163
  %237 = vmatpush.bf16.msra.mxu0 %v159
  %238 = vmatpush.bf16.msra.mxu0 %v155
  %239 = vmatmul.bf16.gmra.mxu0 %v57
  %v240 = vpop.f32.mrf.mxu0
  %v241 = vadd.f32 0.0, %v240
  %v242 = vpop.f32.mrf.mxu0
  %243 = vdwg.mxu0
  %244 = vmatpush.bf16.msra.mxu0 %v184
  %245 = vmatpush.bf16.msra.mxu0 %v180
  %246 = vmatpush.bf16.msra.mxu0 %v176
  %247 = vmatpush.bf16.msra.mxu0 %v172
  %248 = vmatpush.bf16.msra.mxu0 %v168
  %249 = vmatpush.bf16.msra.mxu0 %v164
  %250 = vmatpush.bf16.msra.mxu0 %v160
  %251 = vmatpush.bf16.msra.mxu0 %v156
  %252 = vmatmul.bf16.gmra.mxu0 %v57
  %v253 = vpop.f32.mrf.mxu0
  %v254 = vadd.f32 0.0, %v253
  %v255 = vpop.f32.mrf.mxu0
  %256 = vdwg.mxu0
  %257 = vmatpush.bf16.msra.mxu0 %v185
  %258 = vmatpush.bf16.msra.mxu0 %v181
  %259 = vmatpush.bf16.msra.mxu0 %v177
  %260 = vmatpush.bf16.msra.mxu0 %v173
  %261 = vmatpush.bf16.msra.mxu0 %v169
  %262 = vmatpush.bf16.msra.mxu0 %v165
  %263 = vmatpush.bf16.msra.mxu0 %v161
  %264 = vmatpush.bf16.msra.mxu0 %v157
  %265 = vmatmul.bf16.gmra.mxu0 %v57
  %v266 = vpop.f32.mrf.mxu0
  %v267 = vadd.f32 0.0, %v266
  %v268 = vpop.f32.mrf.mxu0
  %269 = vdwg.mxu0
  %v270 = vadd.f32 %v53, %v228
  %v271 = vadd.f32 %v54, %v241
  %v272 = vadd.f32 %v55, %v254
  %v273 = vadd.f32 %v56, %v267
  %v274 = vmul.f32 %v270, 0.5
  %v275 = vtanh.pop %v274
  %v276 = vadd.f32 %v275, 1.0
  %v277 = vmul.f32 %v276, 0.5
  %v278 = vmul.f32 %v271, 0.5
  %v279 = vtanh.pop %v278
  %v280 = vadd.f32 %v279, 1.0
  %v281 = vmul.f32 %v280, 0.5
  %v282 = vtanh.pop %v272
  %v283 = vmul.f32 %v273, 0.5
  %v284 = vtanh.pop %v283
  %v285 = vadd.f32 %v284, 1.0
  %v286 = vmul.f32 %v285, 0.5
  %v287 = vmul.f32 %v281, %v50
  %v288 = vmul.f32 %v277, %v282
  %v289 = vadd.f32 %v287, %v288
  %v290 = vtanh.pop %v289
  %v291 = vmul.f32 %v286, %v290
  %v292 = vpack.c.bf16 %v291, %v291
  %293 = vst [vmem:[#allocation4] sm:$0xf] %v292
  %s294 = scalar_lea.vmem %s0, 16
  %v295 = vld [vmem:[%s294] sm:$0xff]
  %v296 = vld [vmem:[%s294 + $0x8] sm:$0xff]
  %v297 = vunpack.c.l.bf16 %v295
  %v298 = vunpack.c.h.bf16 %v295
  %v299 = vunpack.c.l.bf16 %v296
  %v300 = vunpack.c.h.bf16 %v296
  %301 = vmatpush.bf16.msra.mxu0 %v182
  %302 = vmatpush.bf16.msra.mxu0 %v178
  %303 = vmatpush.bf16.msra.mxu0 %v174
  %304 = vmatpush.bf16.msra.mxu0 %v170
  %305 = vmatpush.bf16.msra.mxu0 %v166
  %306 = vmatpush.bf16.msra.mxu0 %v162
  %307 = vmatpush.bf16.msra.mxu0 %v158
  %308 = vmatpush.bf16.msra.mxu0 %v154
  %309 = vmatmul.bf16.gmra.mxu0 %v292
  %v310 = vpop.f32.mrf.mxu0
  %v311 = vadd.f32 0.0, %v310
  %v312 = vpop.f32.mrf.mxu0
  %313 = vdwg.mxu0
  %314 = vmatpush.bf16.msra.mxu0 %v183
  %315 = vmatpush.bf16.msra.mxu0 %v179
  %316 = vmatpush.bf16.msra.mxu0 %v175
  %317 = vmatpush.bf16.msra.mxu0 %v171
  %318 = vmatpush.bf16.msra.mxu0 %v167
  %319 = vmatpush.bf16.msra.mxu0 %v163
  %320 = vmatpush.bf16.msra.mxu0 %v159
  %321 = vmatpush.bf16.msra.mxu0 %v155
  %322 = vmatmul.bf16.gmra.mxu0 %v292
  %v323 = vpop.f32.mrf.mxu0
  %v324 = vadd.f32 0.0, %v323
  %v325 = vpop.f32.mrf.mxu0
  %326 = vdwg.mxu0
  %327 = vmatpush.bf16.msra.mxu0 %v184
  %328 = vmatpush.bf16.msra.mxu0 %v180
  %329 = vmatpush.bf16.msra.mxu0 %v176
  %330 = vmatpush.bf16.msra.mxu0 %v172
  %331 = vmatpush.bf16.msra.mxu0 %v168
  %332 = vmatpush.bf16.msra.mxu0 %v164
  %333 = vmatpush.bf16.msra.mxu0 %v160
  %334 = vmatpush.bf16.msra.mxu0 %v156
  %335 = vmatmul.bf16.gmra.mxu0 %v292
  %v336 = vpop.f32.mrf.mxu0
  %v337 = vadd.f32 0.0, %v336
  %v338 = vpop.f32.mrf.mxu0
  %339 = vdwg.mxu0
  %340 = vmatpush.bf16.msra.mxu0 %v185
  %341 = vmatpush.bf16.msra.mxu0 %v181
  %342 = vmatpush.bf16.msra.mxu0 %v177
  %343 = vmatpush.bf16.msra.mxu0 %v173
  %344 = vmatpush.bf16.msra.mxu0 %v169
  %345 = vmatpush.bf16.msra.mxu0 %v165
  %346 = vmatpush.bf16.msra.mxu0 %v161
  %347 = vmatpush.bf16.msra.mxu0 %v157
  %348 = vmatmul.bf16.gmra.mxu0 %v292
  %v349 = vpop.f32.mrf.mxu0
  %v350 = vadd.f32 0.0, %v349
  %v351 = vpop.f32.mrf.mxu0
  %352 = vdwg.mxu0
  %v353 = vadd.f32 %v297, %v311
  %v354 = vadd.f32 %v298, %v324
  %v355 = vadd.f32 %v299, %v337
  %v356 = vadd.f32 %v300, %v350
  %v357 = vmul.f32 %v353, 0.5
  %v358 = vtanh.pop %v357
  %v359 = vadd.f32 %v358, 1.0
  %v360 = vmul.f32 %v359, 0.5
  %v361 = vmul.f32 %v354, 0.5
  %v362 = vtanh.pop %v361
  %v363 = vadd.f32 %v362, 1.0
  %v364 = vmul.f32 %v363, 0.5
  %v365 = vtanh.pop %v355
  %v366 = vmul.f32 %v356, 0.5
  %v367 = vtanh.pop %v366
  %v368 = vadd.f32 %v367, 1.0
  %v369 = vmul.f32 %v368, 0.5
  %v370 = vmul.f32 %v364, %v289
  %v371 = vmul.f32 %v360, %v365
  %v372 = vadd.f32 %v370, %v371
  %v373 = vtanh.pop %v372
  %v374 = vmul.f32 %v369, %v373
  %v375 = vpack.c.bf16 %v374, %v374
  %s376 = scalar_lea.vmem [#allocation4], 4
  %377 = vst [vmem:[%s376] sm:$0xf] %v375
  %s378 = scalar_lea.vmem %s0, 32
  %v379 = vld [vmem:[%s378] sm:$0xff]
  %v380 = vld [vmem:[%s378 + $0x8] sm:$0xff]
  %v381 = vunpack.c.l.bf16 %v379
  %v382 = vunpack.c.h.bf16 %v379
  %v383 = vunpack.c.l.bf16 %v380
  %v384 = vunpack.c.h.bf16 %v380
  %385 = vmatpush.bf16.msra.mxu0 %v182
  %386 = vmatpush.bf16.msra.mxu0 %v178
  %387 = vmatpush.bf16.msra.mxu0 %v174
  %388 = vmatpush.bf16.msra.mxu0 %v170
  %389 = vmatpush.bf16.msra.mxu0 %v166
  %390 = vmatpush.bf16.msra.mxu0 %v162
  %391 = vmatpush.bf16.msra.mxu0 %v158
  %392 = vmatpush.bf16.msra.mxu0 %v154
  %393 = vmatmul.bf16.gmra.mxu0 %v375
  %v394 = vpop.f32.mrf.mxu0
  %v395 = vadd.f32 0.0, %v394
  %v396 = vpop.f32.mrf.mxu0
  %397 = vdwg.mxu0
  %398 = vmatpush.bf16.msra.mxu0 %v183
  %399 = vmatpush.bf16.msra.mxu0 %v179
  %400 = vmatpush.bf16.msra.mxu0 %v175
  %401 = vmatpush.bf16.msra.mxu0 %v171
  %402 = vmatpush.bf16.msra.mxu0 %v167
  %403 = vmatpush.bf16.msra.mxu0 %v163
  %404 = vmatpush.bf16.msra.mxu0 %v159
  %405 = vmatpush.bf16.msra.mxu0 %v155
  %406 = vmatmul.bf16.gmra.mxu0 %v375
  %v407 = vpop.f32.mrf.mxu0
  %v408 = vadd.f32 0.0, %v407
  %v409 = vpop.f32.mrf.mxu0
  %410 = vdwg.mxu0
  %411 = vmatpush.bf16.msra.mxu0 %v184
  %412 = vmatpush.bf16.msra.mxu0 %v180
  %413 = vmatpush.bf16.msra.mxu0 %v176
  %414 = vmatpush.bf16.msra.mxu0 %v172
  %415 = vmatpush.bf16.msra.mxu0 %v168
  %416 = vmatpush.bf16.msra.mxu0 %v164
  %417 = vmatpush.bf16.msra.mxu0 %v160
  %418 = vmatpush.bf16.msra.mxu0 %v156
  %419 = vmatmul.bf16.gmra.mxu0 %v375
  %v420 = vpop.f32.mrf.mxu0
  %v421 = vadd.f32 0.0, %v420
  %v422 = vpop.f32.mrf.mxu0
  %423 = vdwg.mxu0
  %424 = vmatpush.bf16.msra.mxu0 %v185
  %425 = vmatpush.bf16.msra.mxu0 %v181
  %426 = vmatpush.bf16.msra.mxu0 %v177
  %427 = vmatpush.bf16.msra.mxu0 %v173
  %428 = vmatpush.bf16.msra.mxu0 %v169
  %429 = vmatpush.bf16.msra.mxu0 %v165
  %430 = vmatpush.bf16.msra.mxu0 %v161
  %431 = vmatpush.bf16.msra.mxu0 %v157
  %432 = vmatmul.bf16.gmra.mxu0 %v375
  %v433 = vpop.f32.mrf.mxu0
  %v434 = vadd.f32 0.0, %v433
  %v435 = vpop.f32.mrf.mxu0
  %436 = vdwg.mxu0
  %v437 = vadd.f32 %v381, %v395
  %v438 = vadd.f32 %v382, %v408
  %v439 = vadd.f32 %v383, %v421
  %v440 = vadd.f32 %v384, %v434
  %v441 = vmul.f32 %v437, 0.5
  %v442 = vtanh.pop %v441
  %v443 = vadd.f32 %v442, 1.0
  %v444 = vmul.f32 %v443, 0.5
  %v445 = vmul.f32 %v438, 0.5
  %v446 = vtanh.pop %v445
  %v447 = vadd.f32 %v446, 1.0
  %v448 = vmul.f32 %v447, 0.5
  %v449 = vtanh.pop %v439
  %v450 = vmul.f32 %v440, 0.5
  %v451 = vtanh.pop %v450
  %v452 = vadd.f32 %v451, 1.0
  %v453 = vmul.f32 %v452, 0.5
  %v454 = vmul.f32 %v448, %v372
  %v455 = vmul.f32 %v444, %v449
  %v456 = vadd.f32 %v454, %v455
  %v457 = vtanh.pop %v456
  %v458 = vmul.f32 %v453, %v457
  %v459 = vpack.c.bf16 %v458, %v458
  %s460 = scalar_lea.vmem [#allocation4], 8
  %461 = vst [vmem:[%s460] sm:$0xf] %v459
  %s462 = scalar_lea.vmem %s0, 48
  %v463 = vld [vmem:[%s462] sm:$0xff]
  %v464 = vld [vmem:[%s462 + $0x8] sm:$0xff]
  %v465 = vunpack.c.l.bf16 %v463
  %v466 = vunpack.c.h.bf16 %v463
  %v467 = vunpack.c.l.bf16 %v464
  %v468 = vunpack.c.h.bf16 %v464
  %469 = vmatpush.bf16.msra.mxu0 %v182
  %470 = vmatpush.bf16.msra.mxu0 %v178
  %471 = vmatpush.bf16.msra.mxu0 %v174
  %472 = vmatpush.bf16.msra.mxu0 %v170
  %473 = vmatpush.bf16.msra.mxu0 %v166
  %474 = vmatpush.bf16.msra.mxu0 %v162
  %475 = vmatpush.bf16.msra.mxu0 %v158
  %476 = vmatpush.bf16.msra.mxu0 %v154
  %477 = vmatmul.bf16.gmra.mxu0 %v459
  %v478 = vpop.f32.mrf.mxu0
  %v479 = vadd.f32 0.0, %v478
  %v480 = vpop.f32.mrf.mxu0
  %481 = vdwg.mxu0
  %482 = vmatpush.bf16.msra.mxu0 %v183
  %483 = vmatpush.bf16.msra.mxu0 %v179
  %484 = vmatpush.bf16.msra.mxu0 %v175
  %485 = vmatpush.bf16.msra.mxu0 %v171
  %486 = vmatpush.bf16.msra.mxu0 %v167
  %487 = vmatpush.bf16.msra.mxu0 %v163
  %488 = vmatpush.bf16.msra.mxu0 %v159
  %489 = vmatpush.bf16.msra.mxu0 %v155
  %490 = vmatmul.bf16.gmra.mxu0 %v459
  %v491 = vpop.f32.mrf.mxu0
  %v492 = vadd.f32 0.0, %v491
  %v493 = vpop.f32.mrf.mxu0
  %494 = vdwg.mxu0
  %495 = vmatpush.bf16.msra.mxu0 %v184
  %496 = vmatpush.bf16.msra.mxu0 %v180
  %497 = vmatpush.bf16.msra.mxu0 %v176
  %498 = vmatpush.bf16.msra.mxu0 %v172
  %499 = vmatpush.bf16.msra.mxu0 %v168
  %500 = vmatpush.bf16.msra.mxu0 %v164
  %501 = vmatpush.bf16.msra.mxu0 %v160
  %502 = vmatpush.bf16.msra.mxu0 %v156
  %503 = vmatmul.bf16.gmra.mxu0 %v459
  %v504 = vpop.f32.mrf.mxu0
  %v505 = vadd.f32 0.0, %v504
  %v506 = vpop.f32.mrf.mxu0
  %507 = vdwg.mxu0
  %508 = vmatpush.bf16.msra.mxu0 %v185
  %509 = vmatpush.bf16.msra.mxu0 %v181
  %510 = vmatpush.bf16.msra.mxu0 %v177
  %511 = vmatpush.bf16.msra.mxu0 %v173
  %512 = vmatpush.bf16.msra.mxu0 %v169
  %513 = vmatpush.bf16.msra.mxu0 %v165
  %514 = vmatpush.bf16.msra.mxu0 %v161
  %515 = vmatpush.bf16.msra.mxu0 %v157
  %516 = vmatmul.bf16.gmra.mxu0 %v459
  %v517 = vpop.f32.mrf.mxu0
  %v518 = vadd.f32 0.0, %v517
  %v519 = vpop.f32.mrf.mxu0
  %520 = vdwg.mxu0
  %v521 = vadd.f32 %v465, %v479
  %v522 = vadd.f32 %v466, %v492
  %v523 = vadd.f32 %v467, %v505
  %v524 = vadd.f32 %v468, %v518
  %v525 = vmul.f32 %v521, 0.5
  %v526 = vtanh.pop %v525
  %v527 = vadd.f32 %v526, 1.0
  %v528 = vmul.f32 %v527, 0.5
  %v529 = vmul.f32 %v522, 0.5
  %v530 = vtanh.pop %v529
  %v531 = vadd.f32 %v530, 1.0
  %v532 = vmul.f32 %v531, 0.5
  %v533 = vtanh.pop %v523
  %v534 = vmul.f32 %v524, 0.5
  %v535 = vtanh.pop %v534
  %v536 = vadd.f32 %v535, 1.0
  %v537 = vmul.f32 %v536, 0.5
  %v538 = vmul.f32 %v532, %v456
  %v539 = vmul.f32 %v528, %v533
  %v540 = vadd.f32 %v538, %v539
  %v541 = vtanh.pop %v540
  %v542 = vmul.f32 %v537, %v541
  %v543 = vpack.c.bf16 %v542, %v542
  %s544 = scalar_lea.vmem [#allocation4], 12
  %545 = vst [vmem:[%s544] sm:$0xf] %v543
  %s546 = scalar_lea.vmem %s0, 64
  %v547 = vld [vmem:[%s546] sm:$0xff]
  %v548 = vld [vmem:[%s546 + $0x8] sm:$0xff]
  %v549 = vunpack.c.l.bf16 %v547
  %v550 = vunpack.c.h.bf16 %v547
  %v551 = vunpack.c.l.bf16 %v548
  %v552 = vunpack.c.h.bf16 %v548
  %553 = vmatpush.bf16.msra.mxu0 %v182
  %554 = vmatpush.bf16.msra.mxu0 %v178
  %555 = vmatpush.bf16.msra.mxu0 %v174
  %556 = vmatpush.bf16.msra.mxu0 %v170
  %557 = vmatpush.bf16.msra.mxu0 %v166
  %558 = vmatpush.bf16.msra.mxu0 %v162
  %559 = vmatpush.bf16.msra.mxu0 %v158
  %560 = vmatpush.bf16.msra.mxu0 %v154
  %561 = vmatmul.bf16.gmra.mxu0 %v543
  %v562 = vpop.f32.mrf.mxu0
  %v563 = vadd.f32 0.0, %v562
  %v564 = vpop.f32.mrf.mxu0
  %565 = vdwg.mxu0
  %566 = vmatpush.bf16.msra.mxu0 %v183
  %567 = vmatpush.bf16.msra.mxu0 %v179
  %568 = vmatpush.bf16.msra.mxu0 %v175
  %569 = vmatpush.bf16.msra.mxu0 %v171
  %570 = vmatpush.bf16.msra.mxu0 %v167
  %571 = vmatpush.bf16.msra.mxu0 %v163
  %572 = vmatpush.bf16.msra.mxu0 %v159
  %573 = vmatpush.bf16.msra.mxu0 %v155
  %574 = vmatmul.bf16.gmra.mxu0 %v543
  %v575 = vpop.f32.mrf.mxu0
  %v576 = vadd.f32 0.0, %v575
  %v577 = vpop.f32.mrf.mxu0
  %578 = vdwg.mxu0
  %579 = vmatpush.bf16.msra.mxu0 %v184
  %580 = vmatpush.bf16.msra.mxu0 %v180
  %581 = vmatpush.bf16.msra.mxu0 %v176
  %582 = vmatpush.bf16.msra.mxu0 %v172
  %583 = vmatpush.bf16.msra.mxu0 %v168
  %584 = vmatpush.bf16.msra.mxu0 %v164
  %585 = vmatpush.bf16.msra.mxu0 %v160
  %586 = vmatpush.bf16.msra.mxu0 %v156
  %587 = vmatmul.bf16.gmra.mxu0 %v543
  %v588 = vpop.f32.mrf.mxu0
  %v589 = vadd.f32 0.0, %v588
  %v590 = vpop.f32.mrf.mxu0
  %591 = vdwg.mxu0
  %592 = vmatpush.bf16.msra.mxu0 %v185
  %593 = vmatpush.bf16.msra.mxu0 %v181
  %594 = vmatpush.bf16.msra.mxu0 %v177
  %595 = vmatpush.bf16.msra.mxu0 %v173
  %596 = vmatpush.bf16.msra.mxu0 %v169
  %597 = vmatpush.bf16.msra.mxu0 %v165
  %598 = vmatpush.bf16.msra.mxu0 %v161
  %599 = vmatpush.bf16.msra.mxu0 %v157
  %600 = vmatmul.bf16.gmra.mxu0 %v543
  %v601 = vpop.f32.mrf.mxu0
  %v602 = vadd.f32 0.0, %v601
  %v603 = vpop.f32.mrf.mxu0
  %604 = vdwg.mxu0
  %v605 = vadd.f32 %v549, %v563
  %v606 = vadd.f32 %v550, %v576
  %v607 = vadd.f32 %v551, %v589
  %v608 = vadd.f32 %v552, %v602
  %v609 = vmul.f32 %v605, 0.5
  %v610 = vtanh.pop %v609
  %v611 = vadd.f32 %v610, 1.0
  %v612 = vmul.f32 %v611, 0.5
  %v613 = vmul.f32 %v606, 0.5
  %v614 = vtanh.pop %v613
  %v615 = vadd.f32 %v614, 1.0
  %v616 = vmul.f32 %v615, 0.5
  %v617 = vtanh.pop %v607
  %v618 = vmul.f32 %v608, 0.5
  %v619 = vtanh.pop %v618
  %v620 = vadd.f32 %v619, 1.0
  %v621 = vmul.f32 %v620, 0.5
  %v622 = vmul.f32 %v616, %v540
  %v623 = vmul.f32 %v612, %v617
  %v624 = vadd.f32 %v622, %v623
  %v625 = vtanh.pop %v624
  %v626 = vmul.f32 %v621, %v625
  %v627 = vpack.c.bf16 %v626, %v626
  %s628 = scalar_lea.vmem [#allocation4], 16
  %629 = vst [vmem:[%s628] sm:$0xf] %v627
  %s630 = scalar_lea.vmem %s0, 80
  %v631 = vld [vmem:[%s630] sm:$0xff]
  %v632 = vld [vmem:[%s630 + $0x8] sm:$0xff]
  %v633 = vunpack.c.l.bf16 %v631
  %v634 = vunpack.c.h.bf16 %v631
  %v635 = vunpack.c.l.bf16 %v632
  %v636 = vunpack.c.h.bf16 %v632
  %637 = vmatpush.bf16.msra.mxu0 %v182
  %638 = vmatpush.bf16.msra.mxu0 %v178
  %639 = vmatpush.bf16.msra.mxu0 %v174
  %640 = vmatpush.bf16.msra.mxu0 %v170
  %641 = vmatpush.bf16.msra.mxu0 %v166
  %642 = vmatpush.bf16.msra.mxu0 %v162
  %643 = vmatpush.bf16.msra.mxu0 %v158
  %644 = vmatpush.bf16.msra.mxu0 %v154
  %645 = vmatmul.bf16.gmra.mxu0 %v627
  %v646 = vpop.f32.mrf.mxu0
  %v647 = vadd.f32 0.0, %v646
  %v648 = vpop.f32.mrf.mxu0
  %649 = vdwg.mxu0
  %650 = vmatpush.bf16.msra.mxu0 %v183
  %651 = vmatpush.bf16.msra.mxu0 %v179
  %652 = vmatpush.bf16.msra.mxu0 %v175
  %653 = vmatpush.bf16.msra.mxu0 %v171
  %654 = vmatpush.bf16.msra.mxu0 %v167
  %655 = vmatpush.bf16.msra.mxu0 %v163
  %656 = vmatpush.bf16.msra.mxu0 %v159
  %657 = vmatpush.bf16.msra.mxu0 %v155
  %658 = vmatmul.bf16.gmra.mxu0 %v627
  %v659 = vpop.f32.mrf.mxu0
  %v660 = vadd.f32 0.0, %v659
  %v661 = vpop.f32.mrf.mxu0
  %662 = vdwg.mxu0
  %663 = vmatpush.bf16.msra.mxu0 %v184
  %664 = vmatpush.bf16.msra.mxu0 %v180
  %665 = vmatpush.bf16.msra.mxu0 %v176
  %666 = vmatpush.bf16.msra.mxu0 %v172
  %667 = vmatpush.bf16.msra.mxu0 %v168
  %668 = vmatpush.bf16.msra.mxu0 %v164
  %669 = vmatpush.bf16.msra.mxu0 %v160
  %670 = vmatpush.bf16.msra.mxu0 %v156
  %671 = vmatmul.bf16.gmra.mxu0 %v627
  %v672 = vpop.f32.mrf.mxu0
  %v673 = vadd.f32 0.0, %v672
  %v674 = vpop.f32.mrf.mxu0
  %675 = vdwg.mxu0
  %676 = vmatpush.bf16.msra.mxu0 %v185
  %677 = vmatpush.bf16.msra.mxu0 %v181
  %678 = vmatpush.bf16.msra.mxu0 %v177
  %679 = vmatpush.bf16.msra.mxu0 %v173
  %680 = vmatpush.bf16.msra.mxu0 %v169
  %681 = vmatpush.bf16.msra.mxu0 %v165
  %682 = vmatpush.bf16.msra.mxu0 %v161
  %683 = vmatpush.bf16.msra.mxu0 %v157
  %684 = vmatmul.bf16.gmra.mxu0 %v627
  %v685 = vpop.f32.mrf.mxu0
  %v686 = vadd.f32 0.0, %v685
  %v687 = vpop.f32.mrf.mxu0
  %688 = vdwg.mxu0
  %v689 = vadd.f32 %v633, %v647
  %v690 = vadd.f32 %v634, %v660
  %v691 = vadd.f32 %v635, %v673
  %v692 = vadd.f32 %v636, %v686
  %v693 = vmul.f32 %v689, 0.5
  %v694 = vtanh.pop %v693
  %v695 = vadd.f32 %v694, 1.0
  %v696 = vmul.f32 %v695, 0.5
  %v697 = vmul.f32 %v690, 0.5
  %v698 = vtanh.pop %v697
  %v699 = vadd.f32 %v698, 1.0
  %v700 = vmul.f32 %v699, 0.5
  %v701 = vtanh.pop %v691
  %v702 = vmul.f32 %v692, 0.5
  %v703 = vtanh.pop %v702
  %v704 = vadd.f32 %v703, 1.0
  %v705 = vmul.f32 %v704, 0.5
  %v706 = vmul.f32 %v700, %v624
  %v707 = vmul.f32 %v696, %v701
  %v708 = vadd.f32 %v706, %v707
  %v709 = vtanh.pop %v708
  %v710 = vmul.f32 %v705, %v709
  %v711 = vpack.c.bf16 %v710, %v710
  %s712 = scalar_lea.vmem [#allocation4], 20
  %713 = vst [vmem:[%s712] sm:$0xf] %v711
  %s714 = scalar_lea.vmem %s0, 96
  %v715 = vld [vmem:[%s714] sm:$0xff]
  %v716 = vld [vmem:[%s714 + $0x8] sm:$0xff]
  %v717 = vunpack.c.l.bf16 %v715
  %v718 = vunpack.c.h.bf16 %v715
  %v719 = vunpack.c.l.bf16 %v716
  %v720 = vunpack.c.h.bf16 %v716
  %721 = vmatpush.bf16.msra.mxu0 %v182
  %722 = vmatpush.bf16.msra.mxu0 %v178
  %723 = vmatpush.bf16.msra.mxu0 %v174
  %724 = vmatpush.bf16.msra.mxu0 %v170
  %725 = vmatpush.bf16.msra.mxu0 %v166
  %726 = vmatpush.bf16.msra.mxu0 %v162
  %727 = vmatpush.bf16.msra.mxu0 %v158
  %728 = vmatpush.bf16.msra.mxu0 %v154
  %729 = vmatmul.bf16.gmra.mxu0 %v711
  %v730 = vpop.f32.mrf.mxu0
  %v731 = vadd.f32 0.0, %v730
  %v732 = vpop.f32.mrf.mxu0
  %733 = vdwg.mxu0
  %734 = vmatpush.bf16.msra.mxu0 %v183
  %735 = vmatpush.bf16.msra.mxu0 %v179
  %736 = vmatpush.bf16.msra.mxu0 %v175
  %737 = vmatpush.bf16.msra.mxu0 %v171
  %738 = vmatpush.bf16.msra.mxu0 %v167
  %739 = vmatpush.bf16.msra.mxu0 %v163
  %740 = vmatpush.bf16.msra.mxu0 %v159
  %741 = vmatpush.bf16.msra.mxu0 %v155
  %742 = vmatmul.bf16.gmra.mxu0 %v711
  %v743 = vpop.f32.mrf.mxu0
  %v744 = vadd.f32 0.0, %v743
  %v745 = vpop.f32.mrf.mxu0
  %746 = vdwg.mxu0
  %747 = vmatpush.bf16.msra.mxu0 %v184
  %748 = vmatpush.bf16.msra.mxu0 %v180
  %749 = vmatpush.bf16.msra.mxu0 %v176
  %750 = vmatpush.bf16.msra.mxu0 %v172
  %751 = vmatpush.bf16.msra.mxu0 %v168
  %752 = vmatpush.bf16.msra.mxu0 %v164
  %753 = vmatpush.bf16.msra.mxu0 %v160
  %754 = vmatpush.bf16.msra.mxu0 %v156
  %755 = vmatmul.bf16.gmra.mxu0 %v711
  %v756 = vpop.f32.mrf.mxu0
  %v757 = vadd.f32 0.0, %v756
  %v758 = vpop.f32.mrf.mxu0
  %759 = vdwg.mxu0
  %760 = vmatpush.bf16.msra.mxu0 %v185
  %761 = vmatpush.bf16.msra.mxu0 %v181
  %762 = vmatpush.bf16.msra.mxu0 %v177
  %763 = vmatpush.bf16.msra.mxu0 %v173
  %764 = vmatpush.bf16.msra.mxu0 %v169
  %765 = vmatpush.bf16.msra.mxu0 %v165
  %766 = vmatpush.bf16.msra.mxu0 %v161
  %767 = vmatpush.bf16.msra.mxu0 %v157
  %768 = vmatmul.bf16.gmra.mxu0 %v711
  %v769 = vpop.f32.mrf.mxu0
  %v770 = vadd.f32 0.0, %v769
  %v771 = vpop.f32.mrf.mxu0
  %772 = vdwg.mxu0
  %v773 = vadd.f32 %v717, %v731
  %v774 = vadd.f32 %v718, %v744
  %v775 = vadd.f32 %v719, %v757
  %v776 = vadd.f32 %v720, %v770
  %v777 = vmul.f32 %v773, 0.5
  %v778 = vtanh.pop %v777
  %v779 = vadd.f32 %v778, 1.0
  %v780 = vmul.f32 %v779, 0.5
  %v781 = vmul.f32 %v774, 0.5
  %v782 = vtanh.pop %v781
  %v783 = vadd.f32 %v782, 1.0
  %v784 = vmul.f32 %v783, 0.5
  %v785 = vtanh.pop %v775
  %v786 = vmul.f32 %v776, 0.5
  %v787 = vtanh.pop %v786
  %v788 = vadd.f32 %v787, 1.0
  %v789 = vmul.f32 %v788, 0.5
  %v790 = vmul.f32 %v784, %v708
  %v791 = vmul.f32 %v780, %v785
  %v792 = vadd.f32 %v790, %v791
  %v793 = vtanh.pop %v792
  %v794 = vmul.f32 %v789, %v793
  %v795 = vpack.c.bf16 %v794, %v794
  %s796 = scalar_lea.vmem [#allocation4], 24
  %797 = vst [vmem:[%s796] sm:$0xf] %v795
  %s798 = scalar_lea.vmem %s0, 112
  %v799 = vld [vmem:[%s798] sm:$0xff]
  %v800 = vld [vmem:[%s798 + $0x8] sm:$0xff]
  %v801 = vunpack.c.l.bf16 %v799
  %v802 = vunpack.c.h.bf16 %v799
  %v803 = vunpack.c.l.bf16 %v800
  %v804 = vunpack.c.h.bf16 %v800
  %805 = vmatpush.bf16.msra.mxu0 %v182
  %806 = vmatpush.bf16.msra.mxu0 %v178
  %807 = vmatpush.bf16.msra.mxu0 %v174
  %808 = vmatpush.bf16.msra.mxu0 %v170
  %809 = vmatpush.bf16.msra.mxu0 %v166
  %810 = vmatpush.bf16.msra.mxu0 %v162
  %811 = vmatpush.bf16.msra.mxu0 %v158
  %812 = vmatpush.bf16.msra.mxu0 %v154
  %813 = vmatmul.bf16.gmra.mxu0 %v795
  %v814 = vpop.f32.mrf.mxu0
  %v815 = vadd.f32 0.0, %v814
  %v816 = vpop.f32.mrf.mxu0
  %817 = vdwg.mxu0
  %818 = vmatpush.bf16.msra.mxu0 %v183
  %819 = vmatpush.bf16.msra.mxu0 %v179
  %820 = vmatpush.bf16.msra.mxu0 %v175
  %821 = vmatpush.bf16.msra.mxu0 %v171
  %822 = vmatpush.bf16.msra.mxu0 %v167
  %823 = vmatpush.bf16.msra.mxu0 %v163
  %824 = vmatpush.bf16.msra.mxu0 %v159
  %825 = vmatpush.bf16.msra.mxu0 %v155
  %826 = vmatmul.bf16.gmra.mxu0 %v795
  %v827 = vpop.f32.mrf.mxu0
  %v828 = vadd.f32 0.0, %v827
  %v829 = vpop.f32.mrf.mxu0
  %830 = vdwg.mxu0
  %831 = vmatpush.bf16.msra.mxu0 %v184
  %832 = vmatpush.bf16.msra.mxu0 %v180
  %833 = vmatpush.bf16.msra.mxu0 %v176
  %834 = vmatpush.bf16.msra.mxu0 %v172
  %835 = vmatpush.bf16.msra.mxu0 %v168
  %836 = vmatpush.bf16.msra.mxu0 %v164
  %837 = vmatpush.bf16.msra.mxu0 %v160
  %838 = vmatpush.bf16.msra.mxu0 %v156
  %839 = vmatmul.bf16.gmra.mxu0 %v795
  %v840 = vpop.f32.mrf.mxu0
  %v841 = vadd.f32 0.0, %v840
  %v842 = vpop.f32.mrf.mxu0
  %843 = vdwg.mxu0
  %844 = vmatpush.bf16.msra.mxu0 %v185
  %845 = vmatpush.bf16.msra.mxu0 %v181
  %846 = vmatpush.bf16.msra.mxu0 %v177
  %847 = vmatpush.bf16.msra.mxu0 %v173
  %848 = vmatpush.bf16.msra.mxu0 %v169
  %849 = vmatpush.bf16.msra.mxu0 %v165
  %850 = vmatpush.bf16.msra.mxu0 %v161
  %851 = vmatpush.bf16.msra.mxu0 %v157
  %852 = vmatmul.bf16.gmra.mxu0 %v795
  %v853 = vpop.f32.mrf.mxu0
  %v854 = vadd.f32 0.0, %v853
  %v855 = vpop.f32.mrf.mxu0
  %856 = vdwg.mxu0
  %v857 = vadd.f32 %v801, %v815
  %v858 = vadd.f32 %v802, %v828
  %v859 = vadd.f32 %v803, %v841
  %v860 = vadd.f32 %v804, %v854
  %v861 = vmul.f32 %v857, 0.5
  %v862 = vtanh.pop %v861
  %v863 = vadd.f32 %v862, 1.0
  %v864 = vmul.f32 %v863, 0.5
  %v865 = vmul.f32 %v858, 0.5
  %v866 = vtanh.pop %v865
  %v867 = vadd.f32 %v866, 1.0
  %v868 = vmul.f32 %v867, 0.5
  %v869 = vtanh.pop %v859
  %v870 = vmul.f32 %v860, 0.5
  %v871 = vtanh.pop %v870
  %v872 = vadd.f32 %v871, 1.0
  %v873 = vmul.f32 %v872, 0.5
  %v874 = vmul.f32 %v868, %v792
  %v875 = vmul.f32 %v864, %v869
  %v876 = vadd.f32 %v874, %v875
  %v877 = vtanh.pop %v876
  %v878 = vmul.f32 %v873, %v877
  %v879 = vpack.c.bf16 %v878, %v878
  %s880 = scalar_lea.vmem [#allocation4], 28
  %881 = vst [vmem:[%s880] sm:$0xf] %v879
  %882 = vst [vmem:[#allocation2] sm:$0xff] %v878
  %883 = vst [vmem:[#allocation3] sm:$0xff] %v876
  %v884 = vld [vmem:[#allocation4] sm:$0xf]
  %v886 = vrot.slane %v884, 3
  %vm887 = vcmask 1040384
  %v890 = vsel %vm887, %v884, %v886
  %vm892 = vcmask 1041409
  %v893 = vsel %vm892, %v884, %v886
  %v895 = vrot.slane %v893, 1
  %vm896 = vcmask 1042434
  %v897 = vsel %vm896, %v884, %v886
  %v899 = vrot.slane %v897, 2
  %vm900 = vcmask 1043459
  %v901 = vsel %vm900, %v884, %v886
  %v903 = vrot.slane %v901, 3
  %v904 = vunpack.i.l.s16 %v890
  %v905 = vunpack.i.h.s16 %v890
  %v906 = vunpack.i.l.s16 %v895
  %v907 = vunpack.i.h.s16 %v895
  %v908 = vunpack.i.l.s16 %v899
  %v909 = vunpack.i.h.s16 %v899
  %v910 = vunpack.i.l.s16 %v903
  %v911 = vunpack.i.h.s16 %v903
  %v912 = vpack.i.b16 %v904, %v904
  %v913 = vpack.i.b16 %v905, %v905
  %v914 = vpack.i.b16 %v906, %v906
  %v915 = vpack.i.b16 %v907, %v907
  %v916 = vpack.i.b16 %v908, %v908
  %v917 = vpack.i.b16 %v909, %v909
  %v918 = vpack.i.b16 %v910, %v910
  %v919 = vpack.i.b16 %v911, %v911
  %v921 = vunpack.c.l.s4 286326784
  %v922 = vunpack.c.0.s8 %v921
  %v923 = vperm.slane %v912, %v922
  %v925 = vunpack.c.l.s4 286326784
  %v926 = vunpack.c.0.s8 %v925
  %v927 = vperm.slane %v913, %v926
  %v929 = vunpack.c.l.s4 286326784
  %v930 = vunpack.c.0.s8 %v929
  %v931 = vperm.slane %v914, %v930
  %v933 = vunpack.c.l.s4 286326784
  %v934 = vunpack.c.0.s8 %v933
  %v935 = vperm.slane %v915, %v934
  %v937 = vunpack.c.l.s4 286326784
  %v938 = vunpack.c.0.s8 %v937
  %v939 = vperm.slane %v916, %v938
  %v941 = vunpack.c.l.s4 286326784
  %v942 = vunpack.c.0.s8 %v941
  %v943 = vperm.slane %v917, %v942
  %v945 = vunpack.c.l.s4 286326784
  %v946 = vunpack.c.0.s8 %v945
  %v947 = vperm.slane %v918, %v946
  %v949 = vunpack.c.l.s4 286326784
  %v950 = vunpack.c.0.s8 %v949
  %v951 = vperm.slane %v919, %v950
  %vm960 = vcmask 1040384
  %vm961 = vsmask.f32 256
  %vm962 = vmand %vm960, %vm961
  %v963 = vld [vmem:[%s2] sm:$0x1]
  %v964 = vsel %vm962, %v923, %v963
  %965 = vst [vmem:[%s2] sm:$0x1] %v964
  %v966 = vld [vmem:[%s2 + $0x4] sm:$0x1]
  %v967 = vsel %vm962, %v927, %v966
  %968 = vst [vmem:[%s2 + $0x4] sm:$0x1] %v967
  %v969 = vld [vmem:[%s2 + $0x8] sm:$0x1]
  %v970 = vsel %vm962, %v931, %v969
  %971 = vst [vmem:[%s2 + $0x8] sm:$0x1] %v970
  %v972 = vld [vmem:[%s2 + $0xc] sm:$0x1]
  %v973 = vsel %vm962, %v935, %v972
  %974 = vst [vmem:[%s2 + $0xc] sm:$0x1] %v973
  %v975 = vld [vmem:[%s2 + $0x10] sm:$0x1]
  %v976 = vsel %vm962, %v939, %v975
  %977 = vst [vmem:[%s2 + $0x10] sm:$0x1] %v976
  %v978 = vld [vmem:[%s2 + $0x14] sm:$0x1]
  %v979 = vsel %vm962, %v943, %v978
  %980 = vst [vmem:[%s2 + $0x14] sm:$0x1] %v979
  %v981 = vld [vmem:[%s2 + $0x18] sm:$0x1]
  %v982 = vsel %vm962, %v947, %v981
  %983 = vst [vmem:[%s2 + $0x18] sm:$0x1] %v982
  %v984 = vld [vmem:[%s2 + $0x1c] sm:$0x1]
  %v985 = vsel %vm962, %v951, %v984
  %986 = vst [vmem:[%s2 + $0x1c] sm:$0x1] %v985
  %v987 = vld [vmem:[%s376] sm:$0xf]
  %v989 = vrot.slane %v987, 3
  %v992 = vsel %vm887, %v987, %v989
  %v994 = vsel %vm892, %v987, %v989
  %v996 = vrot.slane %v994, 1
  %v997 = vsel %vm896, %v987, %v989
  %v999 = vrot.slane %v997, 2
  %v1000 = vsel %vm900, %v987, %v989
  %v1002 = vrot.slane %v1000, 3
  %v1003 = vunpack.i.l.s16 %v992
  %v1004 = vunpack.i.h.s16 %v992
  %v1005 = vunpack.i.l.s16 %v996
  %v1006 = vunpack.i.h.s16 %v996
  %v1007 = vunpack.i.l.s16 %v999
  %v1008 = vunpack.i.h.s16 %v999
  %v1009 = vunpack.i.l.s16 %v1002
  %v1010 = vunpack.i.h.s16 %v1002
  %v1011 = vpack.i.b16 %v1003, %v1003
  %v1012 = vpack.i.b16 %v1004, %v1004
  %v1013 = vpack.i.b16 %v1005, %v1005
  %v1014 = vpack.i.b16 %v1006, %v1006
  %v1015 = vpack.i.b16 %v1007, %v1007
  %v1016 = vpack.i.b16 %v1008, %v1008
  %v1017 = vpack.i.b16 %v1009, %v1009
  %v1018 = vpack.i.b16 %v1010, %v1010
  %v1020 = vunpack.c.l.s4 286326784
  %v1021 = vunpack.c.0.s8 %v1020
  %v1022 = vperm.slane %v1011, %v1021
  %v1024 = vunpack.c.l.s4 286326784
  %v1025 = vunpack.c.0.s8 %v1024
  %v1026 = vperm.slane %v1012, %v1025
  %v1028 = vunpack.c.l.s4 286326784
  %v1029 = vunpack.c.0.s8 %v1028
  %v1030 = vperm.slane %v1013, %v1029
  %v1032 = vunpack.c.l.s4 286326784
  %v1033 = vunpack.c.0.s8 %v1032
  %v1034 = vperm.slane %v1014, %v1033
  %v1036 = vunpack.c.l.s4 286326784
  %v1037 = vunpack.c.0.s8 %v1036
  %v1038 = vperm.slane %v1015, %v1037
  %v1040 = vunpack.c.l.s4 286326784
  %v1041 = vunpack.c.0.s8 %v1040
  %v1042 = vperm.slane %v1016, %v1041
  %v1044 = vunpack.c.l.s4 286326784
  %v1045 = vunpack.c.0.s8 %v1044
  %v1046 = vperm.slane %v1017, %v1045
  %v1048 = vunpack.c.l.s4 286326784
  %v1049 = vunpack.c.0.s8 %v1048
  %v1050 = vperm.slane %v1018, %v1049
  %vm1059 = vsmask.f32 7938
  %vm1060 = vmand %vm960, %vm1059
  %v1061 = vld [vmem:[%s2] sm:$0x1]
  %v1062 = vsel %vm1060, %v1022, %v1061
  %1063 = vst [vmem:[%s2] sm:$0x1] %v1062
  %v1064 = vld [vmem:[%s2 + $0x4] sm:$0x1]
  %v1065 = vsel %vm1060, %v1026, %v1064
  %1066 = vst [vmem:[%s2 + $0x4] sm:$0x1] %v1065
  %v1067 = vld [vmem:[%s2 + $0x8] sm:$0x1]
  %v1068 = vsel %vm1060, %v1030, %v1067
  %1069 = vst [vmem:[%s2 + $0x8] sm:$0x1] %v1068
  %v1070 = vld [vmem:[%s2 + $0xc] sm:$0x1]
  %v1071 = vsel %vm1060, %v1034, %v1070
  %1072 = vst [vmem:[%s2 + $0xc] sm:$0x1] %v1071
  %v1073 = vld [vmem:[%s2 + $0x10] sm:$0x1]
  %v1074 = vsel %vm1060, %v1038, %v1073
  %1075 = vst [vmem:[%s2 + $0x10] sm:$0x1] %v1074
  %v1076 = vld [vmem:[%s2 + $0x14] sm:$0x1]
  %v1077 = vsel %vm1060, %v1042, %v1076
  %1078 = vst [vmem:[%s2 + $0x14] sm:$0x1] %v1077
  %v1079 = vld [vmem:[%s2 + $0x18] sm:$0x1]
  %v1080 = vsel %vm1060, %v1046, %v1079
  %1081 = vst [vmem:[%s2 + $0x18] sm:$0x1] %v1080
  %v1082 = vld [vmem:[%s2 + $0x1c] sm:$0x1]
  %v1083 = vsel %vm1060, %v1050, %v1082
  %1084 = vst [vmem:[%s2 + $0x1c] sm:$0x1] %v1083
  %v1085 = vld [vmem:[%s460] sm:$0xf]
  %v1087 = vrot.slane %v1085, 3
  %v1090 = vsel %vm887, %v1085, %v1087
  %v1092 = vsel %vm892, %v1085, %v1087
  %v1094 = vrot.slane %v1092, 1
  %v1095 = vsel %vm896, %v1085, %v1087
  %v1097 = vrot.slane %v1095, 2
  %v1098 = vsel %vm900, %v1085, %v1087
  %v1100 = vrot.slane %v1098, 3
  %v1101 = vunpack.i.l.s16 %v1090
  %v1102 = vunpack.i.h.s16 %v1090
  %v1103 = vunpack.i.l.s16 %v1094
  %v1104 = vunpack.i.h.s16 %v1094
  %v1105 = vunpack.i.l.s16 %v1097
  %v1106 = vunpack.i.h.s16 %v1097
  %v1107 = vunpack.i.l.s16 %v1100
  %v1108 = vunpack.i.h.s16 %v1100
  %v1109 = vpack.i.b16 %v1101, %v1101
  %v1110 = vpack.i.b16 %v1102, %v1102
  %v1111 = vpack.i.b16 %v1103, %v1103
  %v1112 = vpack.i.b16 %v1104, %v1104
  %v1113 = vpack.i.b16 %v1105, %v1105
  %v1114 = vpack.i.b16 %v1106, %v1106
  %v1115 = vpack.i.b16 %v1107, %v1107
  %v1116 = vpack.i.b16 %v1108, %v1108
  %v1118 = vunpack.c.l.s4 286326784
  %v1119 = vunpack.c.0.s8 %v1118
  %v1120 = vperm.slane %v1109, %v1119
  %v1122 = vunpack.c.l.s4 286326784
  %v1123 = vunpack.c.0.s8 %v1122
  %v1124 = vperm.slane %v1110, %v1123
  %v1126 = vunpack.c.l.s4 286326784
  %v1127 = vunpack.c.0.s8 %v1126
  %v1128 = vperm.slane %v1111, %v1127
  %v1130 = vunpack.c.l.s4 286326784
  %v1131 = vunpack.c.0.s8 %v1130
  %v1132 = vperm.slane %v1112, %v1131
  %v1134 = vunpack.c.l.s4 286326784
  %v1135 = vunpack.c.0.s8 %v1134
  %v1136 = vperm.slane %v1113, %v1135
  %v1138 = vunpack.c.l.s4 286326784
  %v1139 = vunpack.c.0.s8 %v1138
  %v1140 = vperm.slane %v1114, %v1139
  %v1142 = vunpack.c.l.s4 286326784
  %v1143 = vunpack.c.0.s8 %v1142
  %v1144 = vperm.slane %v1115, %v1143
  %v1146 = vunpack.c.l.s4 286326784
  %v1147 = vunpack.c.0.s8 %v1146
  %v1148 = vperm.slane %v1116, %v1147
  %vm1157 = vcmask 1041409
  %vm1158 = vsmask.f32 1280
  %vm1159 = vmand %vm1157, %vm1158
  %v1160 = vld [vmem:[%s2] sm:$0x2]
  %v1161 = vsel %vm1159, %v1120, %v1160
  %1162 = vst [vmem:[%s2] sm:$0x2] %v1161
  %v1163 = vld [vmem:[%s2 + $0x4] sm:$0x2]
  %v1164 = vsel %vm1159, %v1124, %v1163
  %1165 = vst [vmem:[%s2 + $0x4] sm:$0x2] %v1164
  %v1166 = vld [vmem:[%s2 + $0x8] sm:$0x2]
  %v1167 = vsel %vm1159, %v1128, %v1166
  %1168 = vst [vmem:[%s2 + $0x8] sm:$0x2] %v1167
  %v1169 = vld [vmem:[%s2 + $0xc] sm:$0x2]
  %v1170 = vsel %vm1159, %v1132, %v1169
  %1171 = vst [vmem:[%s2 + $0xc] sm:$0x2] %v1170
  %v1172 = vld [vmem:[%s2 + $0x10] sm:$0x2]
  %v1173 = vsel %vm1159, %v1136, %v1172
  %1174 = vst [vmem:[%s2 + $0x10] sm:$0x2] %v1173
  %v1175 = vld [vmem:[%s2 + $0x14] sm:$0x2]
  %v1176 = vsel %vm1159, %v1140, %v1175
  %1177 = vst [vmem:[%s2 + $0x14] sm:$0x2] %v1176
  %v1178 = vld [vmem:[%s2 + $0x18] sm:$0x2]
  %v1179 = vsel %vm1159, %v1144, %v1178
  %1180 = vst [vmem:[%s2 + $0x18] sm:$0x2] %v1179
  %v1181 = vld [vmem:[%s2 + $0x1c] sm:$0x2]
  %v1182 = vsel %vm1159, %v1148, %v1181
  %1183 = vst [vmem:[%s2 + $0x1c] sm:$0x2] %v1182
  %v1184 = vld [vmem:[%s544] sm:$0xf]
  %v1186 = vrot.slane %v1184, 3
  %v1189 = vsel %vm887, %v1184, %v1186
  %v1191 = vsel %vm892, %v1184, %v1186
  %v1193 = vrot.slane %v1191, 1
  %v1194 = vsel %vm896, %v1184, %v1186
  %v1196 = vrot.slane %v1194, 2
  %v1197 = vsel %vm900, %v1184, %v1186
  %v1199 = vrot.slane %v1197, 3
  %v1200 = vunpack.i.l.s16 %v1189
  %v1201 = vunpack.i.h.s16 %v1189
  %v1202 = vunpack.i.l.s16 %v1193
  %v1203 = vunpack.i.h.s16 %v1193
  %v1204 = vunpack.i.l.s16 %v1196
  %v1205 = vunpack.i.h.s16 %v1196
  %v1206 = vunpack.i.l.s16 %v1199
  %v1207 = vunpack.i.h.s16 %v1199
  %v1208 = vpack.i.b16 %v1200, %v1200
  %v1209 = vpack.i.b16 %v1201, %v1201
  %v1210 = vpack.i.b16 %v1202, %v1202
  %v1211 = vpack.i.b16 %v1203, %v1203
  %v1212 = vpack.i.b16 %v1204, %v1204
  %v1213 = vpack.i.b16 %v1205, %v1205
  %v1214 = vpack.i.b16 %v1206, %v1206
  %v1215 = vpack.i.b16 %v1207, %v1207
  %v1217 = vunpack.c.l.s4 286326784
  %v1218 = vunpack.c.0.s8 %v1217
  %v1219 = vperm.slane %v1208, %v1218
  %v1221 = vunpack.c.l.s4 286326784
  %v1222 = vunpack.c.0.s8 %v1221
  %v1223 = vperm.slane %v1209, %v1222
  %v1225 = vunpack.c.l.s4 286326784
  %v1226 = vunpack.c.0.s8 %v1225
  %v1227 = vperm.slane %v1210, %v1226
  %v1229 = vunpack.c.l.s4 286326784
  %v1230 = vunpack.c.0.s8 %v1229
  %v1231 = vperm.slane %v1211, %v1230
  %v1233 = vunpack.c.l.s4 286326784
  %v1234 = vunpack.c.0.s8 %v1233
  %v1235 = vperm.slane %v1212, %v1234
  %v1237 = vunpack.c.l.s4 286326784
  %v1238 = vunpack.c.0.s8 %v1237
  %v1239 = vperm.slane %v1213, %v1238
  %v1241 = vunpack.c.l.s4 286326784
  %v1242 = vunpack.c.0.s8 %v1241
  %v1243 = vperm.slane %v1214, %v1242
  %v1245 = vunpack.c.l.s4 286326784
  %v1246 = vunpack.c.0.s8 %v1245
  %v1247 = vperm.slane %v1215, %v1246
  %vm1256 = vsmask.f32 7942
  %vm1257 = vmand %vm1157, %vm1256
  %v1258 = vld [vmem:[%s2] sm:$0x2]
  %v1259 = vsel %vm1257, %v1219, %v1258
  %1260 = vst [vmem:[%s2] sm:$0x2] %v1259
  %v1261 = vld [vmem:[%s2 + $0x4] sm:$0x2]
  %v1262 = vsel %vm1257, %v1223, %v1261
  %1263 = vst [vmem:[%s2 + $0x4] sm:$0x2] %v1262
  %v1264 = vld [vmem:[%s2 + $0x8] sm:$0x2]
  %v1265 = vsel %vm1257, %v1227, %v1264
  %1266 = vst [vmem:[%s2 + $0x8] sm:$0x2] %v1265
  %v1267 = vld [vmem:[%s2 + $0xc] sm:$0x2]
  %v1268 = vsel %vm1257, %v1231, %v1267
  %1269 = vst [vmem:[%s2 + $0xc] sm:$0x2] %v1268
  %v1270 = vld [vmem:[%s2 + $0x10] sm:$0x2]
  %v1271 = vsel %vm1257, %v1235, %v1270
  %1272 = vst [vmem:[%s2 + $0x10] sm:$0x2] %v1271
  %v1273 = vld [vmem:[%s2 + $0x14] sm:$0x2]
  %v1274 = vsel %vm1257, %v1239, %v1273
  %1275 = vst [vmem:[%s2 + $0x14] sm:$0x2] %v1274
  %v1276 = vld [vmem:[%s2 + $0x18] sm:$0x2]
  %v1277 = vsel %vm1257, %v1243, %v1276
  %1278 = vst [vmem:[%s2 + $0x18] sm:$0x2] %v1277
  %v1279 = vld [vmem:[%s2 + $0x1c] sm:$0x2]
  %v1280 = vsel %vm1257, %v1247, %v1279
  %1281 = vst [vmem:[%s2 + $0x1c] sm:$0x2] %v1280
  %v1282 = vld [vmem:[%s628] sm:$0xf]
  %v1284 = vrot.slane %v1282, 3
  %v1287 = vsel %vm887, %v1282, %v1284
  %v1289 = vsel %vm892, %v1282, %v1284
  %v1291 = vrot.slane %v1289, 1
  %v1292 = vsel %vm896, %v1282, %v1284
  %v1294 = vrot.slane %v1292, 2
  %v1295 = vsel %vm900, %v1282, %v1284
  %v1297 = vrot.slane %v1295, 3
  %v1298 = vunpack.i.l.s16 %v1287
  %v1299 = vunpack.i.h.s16 %v1287
  %v1300 = vunpack.i.l.s16 %v1291
  %v1301 = vunpack.i.h.s16 %v1291
  %v1302 = vunpack.i.l.s16 %v1294
  %v1303 = vunpack.i.h.s16 %v1294
  %v1304 = vunpack.i.l.s16 %v1297
  %v1305 = vunpack.i.h.s16 %v1297
  %v1306 = vpack.i.b16 %v1298, %v1298
  %v1307 = vpack.i.b16 %v1299, %v1299
  %v1308 = vpack.i.b16 %v1300, %v1300
  %v1309 = vpack.i.b16 %v1301, %v1301
  %v1310 = vpack.i.b16 %v1302, %v1302
  %v1311 = vpack.i.b16 %v1303, %v1303
  %v1312 = vpack.i.b16 %v1304, %v1304
  %v1313 = vpack.i.b16 %v1305, %v1305
  %v1315 = vunpack.c.l.s4 286326784
  %v1316 = vunpack.c.0.s8 %v1315
  %v1317 = vperm.slane %v1306, %v1316
  %v1319 = vunpack.c.l.s4 286326784
  %v1320 = vunpack.c.0.s8 %v1319
  %v1321 = vperm.slane %v1307, %v1320
  %v1323 = vunpack.c.l.s4 286326784
  %v1324 = vunpack.c.0.s8 %v1323
  %v1325 = vperm.slane %v1308, %v1324
  %v1327 = vunpack.c.l.s4 286326784
  %v1328 = vunpack.c.0.s8 %v1327
  %v1329 = vperm.slane %v1309, %v1328
  %v1331 = vunpack.c.l.s4 286326784
  %v1332 = vunpack.c.0.s8 %v1331
  %v1333 = vperm.slane %v1310, %v1332
  %v1335 = vunpack.c.l.s4 286326784
  %v1336 = vunpack.c.0.s8 %v1335
  %v1337 = vperm.slane %v1311, %v1336
  %v1339 = vunpack.c.l.s4 286326784
  %v1340 = vunpack.c.0.s8 %v1339
  %v1341 = vperm.slane %v1312, %v1340
  %v1343 = vunpack.c.l.s4 286326784
  %v1344 = vunpack.c.0.s8 %v1343
  %v1345 = vperm.slane %v1313, %v1344
  %vm1354 = vcmask 1042434
  %vm1355 = vsmask.f32 2304
  %vm1356 = vmand %vm1354, %vm1355
  %v1357 = vld [vmem:[%s2] sm:$0x4]
  %v1358 = vsel %vm1356, %v1317, %v1357
  %1359 = vst [vmem:[%s2] sm:$0x4] %v1358
  %v1360 = vld [vmem:[%s2 + $0x4] sm:$0x4]
  %v1361 = vsel %vm1356, %v1321, %v1360
  %1362 = vst [vmem:[%s2 + $0x4] sm:$0x4] %v1361
  %v1363 = vld [vmem:[%s2 + $0x8] sm:$0x4]
  %v1364 = vsel %vm1356, %v1325, %v1363
  %1365 = vst [vmem:[%s2 + $0x8] sm:$0x4] %v1364
  %v1366 = vld [vmem:[%s2 + $0xc] sm:$0x4]
  %v1367 = vsel %vm1356, %v1329, %v1366
  %1368 = vst [vmem:[%s2 + $0xc] sm:$0x4] %v1367
  %v1369 = vld [vmem:[%s2 + $0x10] sm:$0x4]
  %v1370 = vsel %vm1356, %v1333, %v1369
  %1371 = vst [vmem:[%s2 + $0x10] sm:$0x4] %v1370
  %v1372 = vld [vmem:[%s2 + $0x14] sm:$0x4]
  %v1373 = vsel %vm1356, %v1337, %v1372
  %1374 = vst [vmem:[%s2 + $0x14] sm:$0x4] %v1373
  %v1375 = vld [vmem:[%s2 + $0x18] sm:$0x4]
  %v1376 = vsel %vm1356, %v1341, %v1375
  %1377 = vst [vmem:[%s2 + $0x18] sm:$0x4] %v1376
  %v1378 = vld [vmem:[%s2 + $0x1c] sm:$0x4]
  %v1379 = vsel %vm1356, %v1345, %v1378
  %1380 = vst [vmem:[%s2 + $0x1c] sm:$0x4] %v1379
  %v1381 = vld [vmem:[%s712] sm:$0xf]
  %v1383 = vrot.slane %v1381, 3
  %v1386 = vsel %vm887, %v1381, %v1383
  %v1388 = vsel %vm892, %v1381, %v1383
  %v1390 = vrot.slane %v1388, 1
  %v1391 = vsel %vm896, %v1381, %v1383
  %v1393 = vrot.slane %v1391, 2
  %v1394 = vsel %vm900, %v1381, %v1383
  %v1396 = vrot.slane %v1394, 3
  %v1397 = vunpack.i.l.s16 %v1386
  %v1398 = vunpack.i.h.s16 %v1386
  %v1399 = vunpack.i.l.s16 %v1390
  %v1400 = vunpack.i.h.s16 %v1390
  %v1401 = vunpack.i.l.s16 %v1393
  %v1402 = vunpack.i.h.s16 %v1393
  %v1403 = vunpack.i.l.s16 %v1396
  %v1404 = vunpack.i.h.s16 %v1396
  %v1405 = vpack.i.b16 %v1397, %v1397
  %v1406 = vpack.i.b16 %v1398, %v1398
  %v1407 = vpack.i.b16 %v1399, %v1399
  %v1408 = vpack.i.b16 %v1400, %v1400
  %v1409 = vpack.i.b16 %v1401, %v1401
  %v1410 = vpack.i.b16 %v1402, %v1402
  %v1411 = vpack.i.b16 %v1403, %v1403
  %v1412 = vpack.i.b16 %v1404, %v1404
  %v1414 = vunpack.c.l.s4 286326784
  %v1415 = vunpack.c.0.s8 %v1414
  %v1416 = vperm.slane %v1405, %v1415
  %v1418 = vunpack.c.l.s4 286326784
  %v1419 = vunpack.c.0.s8 %v1418
  %v1420 = vperm.slane %v1406, %v1419
  %v1422 = vunpack.c.l.s4 286326784
  %v1423 = vunpack.c.0.s8 %v1422
  %v1424 = vperm.slane %v1407, %v1423
  %v1426 = vunpack.c.l.s4 286326784
  %v1427 = vunpack.c.0.s8 %v1426
  %v1428 = vperm.slane %v1408, %v1427
  %v1430 = vunpack.c.l.s4 286326784
  %v1431 = vunpack.c.0.s8 %v1430
  %v1432 = vperm.slane %v1409, %v1431
  %v1434 = vunpack.c.l.s4 286326784
  %v1435 = vunpack.c.0.s8 %v1434
  %v1436 = vperm.slane %v1410, %v1435
  %v1438 = vunpack.c.l.s4 286326784
  %v1439 = vunpack.c.0.s8 %v1438
  %v1440 = vperm.slane %v1411, %v1439
  %v1442 = vunpack.c.l.s4 286326784
  %v1443 = vunpack.c.0.s8 %v1442
  %v1444 = vperm.slane %v1412, %v1443
  %vm1453 = vsmask.f32 7946
  %vm1454 = vmand %vm1354, %vm1453
  %v1455 = vld [vmem:[%s2] sm:$0x4]
  %v1456 = vsel %vm1454, %v1416, %v1455
  %1457 = vst [vmem:[%s2] sm:$0x4] %v1456
  %v1458 = vld [vmem:[%s2 + $0x4] sm:$0x4]
  %v1459 = vsel %vm1454, %v1420, %v1458
  %1460 = vst [vmem:[%s2 + $0x4] sm:$0x4] %v1459
  %v1461 = vld [vmem:[%s2 + $0x8] sm:$0x4]
  %v1462 = vsel %vm1454, %v1424, %v1461
  %1463 = vst [vmem:[%s2 + $0x8] sm:$0x4] %v1462
  %v1464 = vld [vmem:[%s2 + $0xc] sm:$0x4]
  %v1465 = vsel %vm1454, %v1428, %v1464
  %1466 = vst [vmem:[%s2 + $0xc] sm:$0x4] %v1465
  %v1467 = vld [vmem:[%s2 + $0x10] sm:$0x4]
  %v1468 = vsel %vm1454, %v1432, %v1467
  %1469 = vst [vmem:[%s2 + $0x10] sm:$0x4] %v1468
  %v1470 = vld [vmem:[%s2 + $0x14] sm:$0x4]
  %v1471 = vsel %vm1454, %v1436, %v1470
  %1472 = vst [vmem:[%s2 + $0x14] sm:$0x4] %v1471
  %v1473 = vld [vmem:[%s2 + $0x18] sm:$0x4]
  %v1474 = vsel %vm1454, %v1440, %v1473
  %1475 = vst [vmem:[%s2 + $0x18] sm:$0x4] %v1474
  %v1476 = vld [vmem:[%s2 + $0x1c] sm:$0x4]
  %v1477 = vsel %vm1454, %v1444, %v1476
  %1478 = vst [vmem:[%s2 + $0x1c] sm:$0x4] %v1477
  %v1479 = vld [vmem:[%s796] sm:$0xf]
  %v1481 = vrot.slane %v1479, 3
  %v1484 = vsel %vm887, %v1479, %v1481
  %v1486 = vsel %vm892, %v1479, %v1481
  %v1488 = vrot.slane %v1486, 1
  %v1489 = vsel %vm896, %v1479, %v1481
  %v1491 = vrot.slane %v1489, 2
  %v1492 = vsel %vm900, %v1479, %v1481
  %v1494 = vrot.slane %v1492, 3
  %v1495 = vunpack.i.l.s16 %v1484
  %v1496 = vunpack.i.h.s16 %v1484
  %v1497 = vunpack.i.l.s16 %v1488
  %v1498 = vunpack.i.h.s16 %v1488
  %v1499 = vunpack.i.l.s16 %v1491
  %v1500 = vunpack.i.h.s16 %v1491
  %v1501 = vunpack.i.l.s16 %v1494
  %v1502 = vunpack.i.h.s16 %v1494
  %v1503 = vpack.i.b16 %v1495, %v1495
  %v1504 = vpack.i.b16 %v1496, %v1496
  %v1505 = vpack.i.b16 %v1497, %v1497
  %v1506 = vpack.i.b16 %v1498, %v1498
  %v1507 = vpack.i.b16 %v1499, %v1499
  %v1508 = vpack.i.b16 %v1500, %v1500
  %v1509 = vpack.i.b16 %v1501, %v1501
  %v1510 = vpack.i.b16 %v1502, %v1502
  %v1512 = vunpack.c.l.s4 286326784
  %v1513 = vunpack.c.0.s8 %v1512
  %v1514 = vperm.slane %v1503, %v1513
  %v1516 = vunpack.c.l.s4 286326784
  %v1517 = vunpack.c.0.s8 %v1516
  %v1518 = vperm.slane %v1504, %v1517
  %v1520 = vunpack.c.l.s4 286326784
  %v1521 = vunpack.c.0.s8 %v1520
  %v1522 = vperm.slane %v1505, %v1521
  %v1524 = vunpack.c.l.s4 286326784
  %v1525 = vunpack.c.0.s8 %v1524
  %v1526 = vperm.slane %v1506, %v1525
  %v1528 = vunpack.c.l.s4 286326784
  %v1529 = vunpack.c.0.s8 %v1528
  %v1530 = vperm.slane %v1507, %v1529
  %v1532 = vunpack.c.l.s4 286326784
  %v1533 = vunpack.c.0.s8 %v1532
  %v1534 = vperm.slane %v1508, %v1533
  %v1536 = vunpack.c.l.s4 286326784
  %v1537 = vunpack.c.0.s8 %v1536
  %v1538 = vperm.slane %v1509, %v1537
  %v1540 = vunpack.c.l.s4 286326784
  %v1541 = vunpack.c.0.s8 %v1540
  %v1542 = vperm.slane %v1510, %v1541
  %vm1551 = vcmask 1043459
  %vm1552 = vsmask.f32 3328
  %vm1553 = vmand %vm1551, %vm1552
  %v1554 = vld [vmem:[%s2] sm:$0x8]
  %v1555 = vsel %vm1553, %v1514, %v1554
  %1556 = vst [vmem:[%s2] sm:$0x8] %v1555
  %v1557 = vld [vmem:[%s2 + $0x4] sm:$0x8]
  %v1558 = vsel %vm1553, %v1518, %v1557
  %1559 = vst [vmem:[%s2 + $0x4] sm:$0x8] %v1558
  %v1560 = vld [vmem:[%s2 + $0x8] sm:$0x8]
  %v1561 = vsel %vm1553, %v1522, %v1560
  %1562 = vst [vmem:[%s2 + $0x8] sm:$0x8] %v1561
  %v1563 = vld [vmem:[%s2 + $0xc] sm:$0x8]
  %v1564 = vsel %vm1553, %v1526, %v1563
  %1565 = vst [vmem:[%s2 + $0xc] sm:$0x8] %v1564
  %v1566 = vld [vmem:[%s2 + $0x10] sm:$0x8]
  %v1567 = vsel %vm1553, %v1530, %v1566
  %1568 = vst [vmem:[%s2 + $0x10] sm:$0x8] %v1567
  %v1569 = vld [vmem:[%s2 + $0x14] sm:$0x8]
  %v1570 = vsel %vm1553, %v1534, %v1569
  %1571 = vst [vmem:[%s2 + $0x14] sm:$0x8] %v1570
  %v1572 = vld [vmem:[%s2 + $0x18] sm:$0x8]
  %v1573 = vsel %vm1553, %v1538, %v1572
  %1574 = vst [vmem:[%s2 + $0x18] sm:$0x8] %v1573
  %v1575 = vld [vmem:[%s2 + $0x1c] sm:$0x8]
  %v1576 = vsel %vm1553, %v1542, %v1575
  %1577 = vst [vmem:[%s2 + $0x1c] sm:$0x8] %v1576
  %v1578 = vld [vmem:[%s880] sm:$0xf]
  %v1580 = vrot.slane %v1578, 3
  %v1583 = vsel %vm887, %v1578, %v1580
  %v1585 = vsel %vm892, %v1578, %v1580
  %v1587 = vrot.slane %v1585, 1
  %v1588 = vsel %vm896, %v1578, %v1580
  %v1590 = vrot.slane %v1588, 2
  %v1591 = vsel %vm900, %v1578, %v1580
  %v1593 = vrot.slane %v1591, 3
  %v1594 = vunpack.i.l.s16 %v1583
  %v1595 = vunpack.i.h.s16 %v1583
  %v1596 = vunpack.i.l.s16 %v1587
  %v1597 = vunpack.i.h.s16 %v1587
  %v1598 = vunpack.i.l.s16 %v1590
  %v1599 = vunpack.i.h.s16 %v1590
  %v1600 = vunpack.i.l.s16 %v1593
  %v1601 = vunpack.i.h.s16 %v1593
  %v1602 = vpack.i.b16 %v1594, %v1594
  %v1603 = vpack.i.b16 %v1595, %v1595
  %v1604 = vpack.i.b16 %v1596, %v1596
  %v1605 = vpack.i.b16 %v1597, %v1597
  %v1606 = vpack.i.b16 %v1598, %v1598
  %v1607 = vpack.i.b16 %v1599, %v1599
  %v1608 = vpack.i.b16 %v1600, %v1600
  %v1609 = vpack.i.b16 %v1601, %v1601
  %v1611 = vunpack.c.l.s4 286326784
  %v1612 = vunpack.c.0.s8 %v1611
  %v1613 = vperm.slane %v1602, %v1612
  %v1615 = vunpack.c.l.s4 286326784
  %v1616 = vunpack.c.0.s8 %v1615
  %v1617 = vperm.slane %v1603, %v1616
  %v1619 = vunpack.c.l.s4 286326784
  %v1620 = vunpack.c.0.s8 %v1619
  %v1621 = vperm.slane %v1604, %v1620
  %v1623 = vunpack.c.l.s4 286326784
  %v1624 = vunpack.c.0.s8 %v1623
  %v1625 = vperm.slane %v1605, %v1624
  %v1627 = vunpack.c.l.s4 286326784
  %v1628 = vunpack.c.0.s8 %v1627
  %v1629 = vperm.slane %v1606, %v1628
  %v1631 = vunpack.c.l.s4 286326784
  %v1632 = vunpack.c.0.s8 %v1631
  %v1633 = vperm.slane %v1607, %v1632
  %v1635 = vunpack.c.l.s4 286326784
  %v1636 = vunpack.c.0.s8 %v1635
  %v1637 = vperm.slane %v1608, %v1636
  %v1639 = vunpack.c.l.s4 286326784
  %v1640 = vunpack.c.0.s8 %v1639
  %v1641 = vperm.slane %v1609, %v1640
  %vm1650 = vsmask.f32 7950
  %vm1651 = vmand %vm1551, %vm1650
  %v1652 = vld [vmem:[%s2] sm:$0x8]
  %v1653 = vsel %vm1651, %v1613, %v1652
  %1654 = vst [vmem:[%s2] sm:$0x8] %v1653
  %v1655 = vld [vmem:[%s2 + $0x4] sm:$0x8]
  %v1656 = vsel %vm1651, %v1617, %v1655
  %1657 = vst [vmem:[%s2 + $0x4] sm:$0x8] %v1656
  %v1658 = vld [vmem:[%s2 + $0x8] sm:$0x8]
  %v1659 = vsel %vm1651, %v1621, %v1658
  %1660 = vst [vmem:[%s2 + $0x8] sm:$0x8] %v1659
  %v1661 = vld [vmem:[%s2 + $0xc] sm:$0x8]
  %v1662 = vsel %vm1651, %v1625, %v1661
  %1663 = vst [vmem:[%s2 + $0xc] sm:$0x8] %v1662
  %v1664 = vld [vmem:[%s2 + $0x10] sm:$0x8]
  %v1665 = vsel %vm1651, %v1629, %v1664
  %1666 = vst [vmem:[%s2 + $0x10] sm:$0x8] %v1665
  %v1667 = vld [vmem:[%s2 + $0x14] sm:$0x8]
  %v1668 = vsel %vm1651, %v1633, %v1667
  %1669 = vst [vmem:[%s2 + $0x14] sm:$0x8] %v1668
  %v1670 = vld [vmem:[%s2 + $0x18] sm:$0x8]
  %v1671 = vsel %vm1651, %v1637, %v1670
  %1672 = vst [vmem:[%s2 + $0x18] sm:$0x8] %v1671
  %v1673 = vld [vmem:[%s2 + $0x1c] sm:$0x8]
  %v1674 = vsel %vm1651, %v1641, %v1673
  %1675 = vst [vmem:[%s2 + $0x1c] sm:$0x8] %v1674
  // Predicated region
  $region14: #{lstm_language_model_forward.2} parent=0 // pred_check
    _
  $region15: #{lstm_language_model_forward.2} parent=0 // pred_check_branch
    %1677 = sbr.rel (0) target = $region17
  $region16: #{lstm_language_model_forward.2} parent=0 // pred_region
    _
  $region17: #{lstm_language_model_forward.2} parent=0 // pred_fallthru
    _
  // Predicated region
  $region18: #{lstm_language_model_forward.2} parent=0 // pred_check
    _
  $region19: #{lstm_language_model_forward.2} parent=0 // pred_check_branch
    %1679 = sbr.rel (0) target = $region21
  $region20: #{lstm_language_model_forward.2} parent=0 // pred_region
    _
  $region21: #{lstm_language_model_forward.2} parent=0 // pred_fallthru
    _

</llo_original>
